<compile_context>
chip_gen: v7x
topology: tpu7x:2x2x1
jax: 0.10.0
libtpu: 0.0.40
codegen_flags: <defaults>
</compile_context>

<pallas_src>
import numpy as np
import jax
import jax.numpy as jnp
from jax import lax
from jax.experimental import pallas as pl
from jax.experimental.pallas import tpu as pltpu

BN_EPS = 1e-5


# ---------------------------------------------------------------------------
# Fused per-layer kernel: conv (block-Toeplitz matmuls) + BN batch stats
# (two-pass, f32) + affine + ReLU, lane-dense bf16 output.
# ---------------------------------------------------------------------------
def _make_fused_layer_kernel(n_batch, oh, kh2, inv_m):
    def kernel(xs_ref, wt_ref, pool_ref, gamma_ref, beta_ref, out_ref):
        # xs_ref:   [N, Hs, Ws*Cin']      bf16  padded (+ space-to-depth) activation
        # wt_ref:   [kh2, Ws*Cin', L]     bf16  banded block-Toeplitz weights, L = OW*Cout
        # pool_ref: [L, L]                f32   0/1 same-channel pooling matrix
        # gamma/beta_ref: [1, L]          f32   per-channel affine tiled to lane layout
        # out_ref:  [N*OH, L]             bf16  lane-dense activation (L = 128 here)
        ld = out_ref.shape[1]

        # ---- conv: per-(batch, row-tap) lane-dense MXU matmuls, f32 accumulation ----
        ys = []
        ssum = jnp.zeros((1, ld), jnp.float32)
        for n in range(n_batch):
            xs_n = xs_ref[n]                                  # [Hs, Ws*Cin'] bf16
            y_n = jnp.zeros((oh, ld), jnp.float32)
            for a in range(kh2):
                y_n = y_n + jnp.dot(xs_n[a:a + oh, :], wt_ref[a],
                                    preferred_element_type=jnp.float32)
            ys.append(y_n)
            ssum = ssum + jnp.sum(y_n, axis=0, keepdims=True)

        # ---- BN batch stats (biased, as PyTorch train-mode normalization) ----
        pool = pool_ref[...]
        mean = jnp.dot(ssum, pool, preferred_element_type=jnp.float32) * inv_m
        ssq = jnp.zeros((1, ld), jnp.float32)
        for n in range(n_batch):
            d = ys[n] - mean                                   # centered -> no cancellation
            ssq = ssq + jnp.sum(d * d, axis=0, keepdims=True)
        var = jnp.dot(ssq, pool, preferred_element_type=jnp.float32) * inv_m
        scale = gamma_ref[...] * lax.rsqrt(var + BN_EPS)
        shift = beta_ref[...] - mean * scale

        # ---- affine + ReLU, lane-dense bf16 store ----
        for n in range(n_batch):
            out_ref[n * oh:(n + 1) * oh, :] = jnp.maximum(
                ys[n] * scale + shift, 0.0).astype(out_ref.dtype)

    return kernel


# ---------------------------------------------------------------------------
# Wrapper glue: pad / space-to-depth (permutation only), Toeplitz weight build,
# per-layer application, parameter init.
# ---------------------------------------------------------------------------
def apply_layer(x_nhwc, params, geom):
    """Conv2d -> BatchNorm2d(train-mode batch stats) -> ReLU, one fused Pallas kernel."""
    w_mat, gamma, beta = params          # w_mat: [kh*kw*Cin, Cout]; conv bias dropped
    kh, kw, stride, pad = geom           # (cancelled exactly by BN mean subtraction).
    N, H, W, Cin = x_nhwc.shape
    Cout = w_mat.shape[1]
    OH = (H + 2 * pad - kh) // stride + 1
    OW = (W + 2 * pad - kw) // stride + 1
    L = OW * Cout                        # lane width of the stored activation (128 here)

    xb = x_nhwc.astype(jnp.bfloat16)
    xp = jnp.pad(xb, ((0, 0), (pad, pad), (pad, pad), (0, 0)))
    w4 = w_mat.reshape(kh, kw, Cin, Cout)

    if stride == 1:
        xs = xp                                           # [N, H+2p, W+2p, Cin]
        kh2, kw2, cin2 = kh, kw, Cin
        w2 = w4
    elif stride == 2:
        # 2x2 space-to-depth turns the 4x4/s2 conv into a 2x2/s1 conv (no duplication).
        assert kh == 4 and kw == 4 and (H + 2 * pad) % 2 == 0 and (W + 2 * pad) % 2 == 0
        hs2, ws2 = (H + 2 * pad) // 2, (W + 2 * pad) // 2
        xs = xp.reshape(N, hs2, 2, ws2, 2, Cin).transpose(0, 1, 3, 2, 4, 5)
        xs = xs.reshape(N, hs2, ws2, 4 * Cin)
        kh2, kw2, cin2 = 2, 2, 4 * Cin
        w2 = w4.reshape(2, 2, 2, 2, Cin, Cout).transpose(0, 2, 1, 3, 4, 5)
        w2 = w2.reshape(2, 2, 4 * Cin, Cout)
    else:
        raise NotImplementedError("only stride 1 or 2 convs in this Encoder")

    _, Hs, Ws, _ = xs.shape
    assert Hs - kh2 + 1 == OH and Ws - kw2 + 1 == OW
    xs3 = xs.reshape(N, Hs, Ws * cin2)                    # lane dim = Ws*Cin'

    # Banded block-Toeplitz weights: W_toe[a, p*Cin'+c, ow*Cout+d] = w2[a, p-ow, c, d]
    # (zero outside the band), so each row-tap is ONE lane-dense MXU matmul.
    T = np.zeros((kw2, OW, Ws), np.float32)
    for b in range(kw2):
        for ow in range(OW):
            T[b, ow, ow + b] = 1.0
    w_toe = jnp.einsum('bop,abcd->apcod', jnp.asarray(T), w2)
    w_toe = w_toe.reshape(kh2, Ws * cin2, L).astype(jnp.bfloat16)

    # 0/1 same-channel pooling matrix (lane l belongs to channel l % Cout).
    ids = np.arange(L) % Cout
    pool = jnp.asarray((ids[:, None] == ids[None, :]).astype(np.float32))

    gamma_lane = jnp.tile(gamma.reshape(1, Cout).astype(jnp.float32), (1, OW))
    beta_lane = jnp.tile(beta.reshape(1, Cout).astype(jnp.float32), (1, OW))

    kernel = _make_fused_layer_kernel(N, OH, kh2, 1.0 / float(N * OH * OW))
    vmem = pltpu.MemorySpace.VMEM
    out2d = pl.pallas_call(
        kernel,
        out_shape=jax.ShapeDtypeStruct((N * OH, L), jnp.bfloat16),
        in_specs=[pl.BlockSpec(memory_space=vmem)] * 5,
        out_specs=pl.BlockSpec(memory_space=vmem),
    )(xs3, w_toe, pool, gamma_lane, beta_lane)

    return out2d.reshape(N, OH, OW, Cout)


def init_encoder_params(key, input_dim=3, ch=8, n_downs=2):
    """Synthetic params matching the Encoder layer shapes (PyTorch default inits)."""
    params, geoms = [], []
    cin, cout = input_dim, ch

    def make(key, kh, kw, cin, cout):
        wk, bk = jax.random.split(key)
        fan_in = kh * kw * cin
        bound = 1.0 / np.sqrt(fan_in)
        # weight laid out [kh, kw, cin, cout] to match the kernel's column ordering
        w = jax.random.uniform(wk, (kh, kw, cin, cout), jnp.float32, -bound, bound)
        b = jax.random.uniform(bk, (1, cout), jnp.float32, -bound, bound)
        return dict(w_mat=w.reshape(kh * kw * cin, cout), bias=b,
                    gamma=jnp.ones((1, cout), jnp.float32),
                    beta=jnp.zeros((1, cout), jnp.float32))

    key, sub = jax.random.split(key)
    params.append(make(sub, 3, 3, cin, cout))
    geoms.append((3, 3, 1, 1))
    cin = cout
    for _ in range(n_downs):
        cout = cin * 2
        key, sub = jax.random.split(key)
        params.append(make(sub, 4, 4, cin, cout))
        geoms.append((4, 4, 2, 1))
        cin = cout
    return params, geoms


def encoder_forward(x_nchw, params, geoms):
    # layout: NCHW -> NHWC for the kernels (channels-last = lane dim), back at the end.
    x = jnp.transpose(x_nchw, (0, 2, 3, 1))
    for p, geom in zip(params, geoms):
        x = apply_layer(x, (p["w_mat"], p["gamma"], p["beta"]), geom)
    return jnp.transpose(x, (0, 3, 1, 2)).astype(jnp.float32)


# ---------------------------------------------------------------------------
# Pure-JAX f32 reference (includes the conv bias, proving it is a BN no-op)
# ---------------------------------------------------------------------------
def encoder_forward_ref(x_nchw, params, geoms):
    x = jnp.transpose(x_nchw, (0, 2, 3, 1))
    for p, (kh, kw, s, pad) in zip(params, geoms):
        w_mat, bias, gamma, beta = p["w_mat"], p["bias"], p["gamma"], p["beta"]
        cin = w_mat.shape[0] // (kh * kw)
        cout = w_mat.shape[1]
        w4 = w_mat.reshape(kh, kw, cin, cout)
        y = lax.conv_general_dilated(
            x, w4, window_strides=(s, s), padding=[(pad, pad), (pad, pad)],
            dimension_numbers=("NHWC", "HWIO", "NHWC"))
        y = y + bias.reshape(1, 1, 1, cout)
        mean = jnp.mean(y, axis=(0, 1, 2), keepdims=True)
        var = jnp.mean((y - mean) ** 2, axis=(0, 1, 2), keepdims=True)
        y = (y - mean) * lax.rsqrt(var + BN_EPS)
        y = y * gamma.reshape(1, 1, 1, cout) + beta.reshape(1, 1, 1, cout)
        x = jnp.maximum(y, 0.0)
    return jnp.transpose(x, (0, 3, 1, 2))


if __name__ == "__main__":
    # Small shapes consistent with Encoder(input_dim=3, ch=8, n_downs=2)
    N, C_IN, H, W = 2, 3, 16, 16
    CH, N_DOWNS = 8, 2

    key = jax.random.PRNGKey(0)
    key, xk = jax.random.split(key)
    x = jax.random.normal(xk, (N, C_IN, H, W), jnp.float32)  # NCHW, like PyTorch

    params, geoms = init_encoder_params(key, input_dim=C_IN, ch=CH, n_downs=N_DOWNS)

    fwd = jax.jit(lambda xx: encoder_forward(xx, params, geoms))
    out = jax.block_until_ready(fwd(x))

    # expected output shape: [N, CH * 2**n_downs, H / 2**n_downs, W / 2**n_downs]
    assert out.shape == (N, CH * (2 ** N_DOWNS), H // (2 ** N_DOWNS), W // (2 ** N_DOWNS)), out.shape

    ref = jax.block_until_ready(encoder_forward_ref(x, params, geoms))
    # bf16 activations between layers + bf16 MXU inputs vs f32 reference.
    np.testing.assert_allclose(np.asarray(out), np.asarray(ref), rtol=4e-2, atol=4e-2)

    print("KERNEL_OK")
</pallas_src>

<mosaic_0001>
module attributes {stable_mosaic.version = 11 : i64} {
  func.func @kernel(%arg0: memref<2x18x54xbf16, #tpu.memory_space<vmem>>, %arg1: memref<3x54x128xbf16, #tpu.memory_space<vmem>>, %arg2: memref<128x128xf32, #tpu.memory_space<vmem>>, %arg3: memref<1x128xf32, #tpu.memory_space<vmem>>, %arg4: memref<1x128xf32, #tpu.memory_space<vmem>>, %arg5: memref<32x128xbf16, #tpu.memory_space<vmem>>) attributes {dimension_semantics = [], scalar_prefetch = 0 : i64, scratch_operands = 0 : i64, tpu.core_type = #tpu.core_type<tc>} {
    %cst = arith.constant 0.000000e+00 : f32
    %0 = vector.broadcast %cst : f32 to vector<1x128xf32>
    %c0 = arith.constant 0 : index
    %c0_0 = arith.constant 0 : index
    %c0_1 = arith.constant 0 : index
    %1 = vector.load %arg0[%c0, %c0_0, %c0_1] : memref<2x18x54xbf16, #tpu.memory_space<vmem>>, vector<1x18x54xbf16>
    %2 = vector.shape_cast %1 : vector<1x18x54xbf16> to vector<18x54xbf16>
    %cst_2 = arith.constant 0.000000e+00 : f32
    %3 = vector.broadcast %cst_2 : f32 to vector<16x128xf32>
    %4 = vector.extract_strided_slice %2 {offsets = [0, 0], sizes = [16, 54], strides = [1, 1]} : vector<18x54xbf16> to vector<16x54xbf16>
    %c0_3 = arith.constant 0 : index
    %c0_4 = arith.constant 0 : index
    %c0_5 = arith.constant 0 : index
    %5 = vector.load %arg1[%c0_3, %c0_4, %c0_5] : memref<3x54x128xbf16, #tpu.memory_space<vmem>>, vector<1x54x128xbf16>
    %6 = vector.shape_cast %5 : vector<1x54x128xbf16> to vector<54x128xbf16>
    %cst_6 = arith.constant dense<0.000000e+00> : vector<16x128xf32>
    %7 = tpu.matmul %4, %6, %cst_6 {dimension_numbers = #tpu.dot_dimension_numbers<[1], [0], [0], [1], [0, 0, 1, 1], [], []>} : vector<16x54xbf16>, vector<54x128xbf16>, vector<16x128xf32> -> vector<16x128xf32>
    %8 = arith.addf %3, %7 : vector<16x128xf32>
    %9 = vector.extract_strided_slice %2 {offsets = [1, 0], sizes = [16, 54], strides = [1, 1]} : vector<18x54xbf16> to vector<16x54xbf16>
    %c1 = arith.constant 1 : index
    %c0_7 = arith.constant 0 : index
    %c0_8 = arith.constant 0 : index
    %10 = vector.load %arg1[%c1, %c0_7, %c0_8] : memref<3x54x128xbf16, #tpu.memory_space<vmem>>, vector<1x54x128xbf16>
    %11 = vector.shape_cast %10 : vector<1x54x128xbf16> to vector<54x128xbf16>
    %cst_9 = arith.constant dense<0.000000e+00> : vector<16x128xf32>
    %12 = tpu.matmul %9, %11, %cst_9 {dimension_numbers = #tpu.dot_dimension_numbers<[1], [0], [0], [1], [0, 0, 1, 1], [], []>} : vector<16x54xbf16>, vector<54x128xbf16>, vector<16x128xf32> -> vector<16x128xf32>
    %13 = arith.addf %8, %12 : vector<16x128xf32>
    %14 = vector.extract_strided_slice %2 {offsets = [2, 0], sizes = [16, 54], strides = [1, 1]} : vector<18x54xbf16> to vector<16x54xbf16>
    %c2 = arith.constant 2 : index
    %c0_10 = arith.constant 0 : index
    %c0_11 = arith.constant 0 : index
    %15 = vector.load %arg1[%c2, %c0_10, %c0_11] : memref<3x54x128xbf16, #tpu.memory_space<vmem>>, vector<1x54x128xbf16>
    %16 = vector.shape_cast %15 : vector<1x54x128xbf16> to vector<54x128xbf16>
    %cst_12 = arith.constant dense<0.000000e+00> : vector<16x128xf32>
    %17 = tpu.matmul %14, %16, %cst_12 {dimension_numbers = #tpu.dot_dimension_numbers<[1], [0], [0], [1], [0, 0, 1, 1], [], []>} : vector<16x54xbf16>, vector<54x128xbf16>, vector<16x128xf32> -> vector<16x128xf32>
    %18 = arith.addf %13, %17 : vector<16x128xf32>
    %cst_13 = arith.constant dense<0.000000e+00> : vector<128xf32>
    %19 = vector.multi_reduction <add>, %18, %cst_13 [0] : vector<16x128xf32> to vector<128xf32>
    %20 = vector.shape_cast %19 : vector<128xf32> to vector<1x128xf32>
    %21 = arith.addf %0, %20 : vector<1x128xf32>
    %c1_14 = arith.constant 1 : index
    %c0_15 = arith.constant 0 : index
    %c0_16 = arith.constant 0 : index
    %22 = vector.load %arg0[%c1_14, %c0_15, %c0_16] : memref<2x18x54xbf16, #tpu.memory_space<vmem>>, vector<1x18x54xbf16>
    %23 = vector.shape_cast %22 : vector<1x18x54xbf16> to vector<18x54xbf16>
    %cst_17 = arith.constant 0.000000e+00 : f32
    %24 = vector.broadcast %cst_17 : f32 to vector<16x128xf32>
    %25 = vector.extract_strided_slice %23 {offsets = [0, 0], sizes = [16, 54], strides = [1, 1]} : vector<18x54xbf16> to vector<16x54xbf16>
    %c0_18 = arith.constant 0 : index
    %c0_19 = arith.constant 0 : index
    %c0_20 = arith.constant 0 : index
    %26 = vector.load %arg1[%c0_18, %c0_19, %c0_20] : memref<3x54x128xbf16, #tpu.memory_space<vmem>>, vector<1x54x128xbf16>
    %27 = vector.shape_cast %26 : vector<1x54x128xbf16> to vector<54x128xbf16>
    %cst_21 = arith.constant dense<0.000000e+00> : vector<16x128xf32>
    %28 = tpu.matmul %25, %27, %cst_21 {dimension_numbers = #tpu.dot_dimension_numbers<[1], [0], [0], [1], [0, 0, 1, 1], [], []>} : vector<16x54xbf16>, vector<54x128xbf16>, vector<16x128xf32> -> vector<16x128xf32>
    %29 = arith.addf %24, %28 : vector<16x128xf32>
    %30 = vector.extract_strided_slice %23 {offsets = [1, 0], sizes = [16, 54], strides = [1, 1]} : vector<18x54xbf16> to vector<16x54xbf16>
    %c1_22 = arith.constant 1 : index
    %c0_23 = arith.constant 0 : index
    %c0_24 = arith.constant 0 : index
    %31 = vector.load %arg1[%c1_22, %c0_23, %c0_24] : memref<3x54x128xbf16, #tpu.memory_space<vmem>>, vector<1x54x128xbf16>
    %32 = vector.shape_cast %31 : vector<1x54x128xbf16> to vector<54x128xbf16>
    %cst_25 = arith.constant dense<0.000000e+00> : vector<16x128xf32>
    %33 = tpu.matmul %30, %32, %cst_25 {dimension_numbers = #tpu.dot_dimension_numbers<[1], [0], [0], [1], [0, 0, 1, 1], [], []>} : vector<16x54xbf16>, vector<54x128xbf16>, vector<16x128xf32> -> vector<16x128xf32>
    %34 = arith.addf %29, %33 : vector<16x128xf32>
    %35 = vector.extract_strided_slice %23 {offsets = [2, 0], sizes = [16, 54], strides = [1, 1]} : vector<18x54xbf16> to vector<16x54xbf16>
    %c2_26 = arith.constant 2 : index
    %c0_27 = arith.constant 0 : index
    %c0_28 = arith.constant 0 : index
    %36 = vector.load %arg1[%c2_26, %c0_27, %c0_28] : memref<3x54x128xbf16, #tpu.memory_space<vmem>>, vector<1x54x128xbf16>
    %37 = vector.shape_cast %36 : vector<1x54x128xbf16> to vector<54x128xbf16>
    %cst_29 = arith.constant dense<0.000000e+00> : vector<16x128xf32>
    %38 = tpu.matmul %35, %37, %cst_29 {dimension_numbers = #tpu.dot_dimension_numbers<[1], [0], [0], [1], [0, 0, 1, 1], [], []>} : vector<16x54xbf16>, vector<54x128xbf16>, vector<16x128xf32> -> vector<16x128xf32>
    %39 = arith.addf %34, %38 : vector<16x128xf32>
    %cst_30 = arith.constant dense<0.000000e+00> : vector<128xf32>
    %40 = vector.multi_reduction <add>, %39, %cst_30 [0] : vector<16x128xf32> to vector<128xf32>
    %41 = vector.shape_cast %40 : vector<128xf32> to vector<1x128xf32>
    %42 = arith.addf %21, %41 : vector<1x128xf32>
    %c0_31 = arith.constant 0 : index
    %c0_32 = arith.constant 0 : index
    %43 = vector.load %arg2[%c0_31, %c0_32] : memref<128x128xf32, #tpu.memory_space<vmem>>, vector<128x128xf32>
    %cst_33 = arith.constant dense<0.000000e+00> : vector<1x128xf32>
    %44 = tpu.matmul %42, %43, %cst_33 {dimension_numbers = #tpu.dot_dimension_numbers<[1], [0], [0], [1], [0, 0, 1, 1], [], []>} : vector<1x128xf32>, vector<128x128xf32>, vector<1x128xf32> -> vector<1x128xf32>
    %cst_34 = arith.constant 0.001953125 : f32
    %45 = vector.broadcast %cst_34 : f32 to vector<1x128xf32>
    %46 = arith.mulf %44, %45 : vector<1x128xf32>
    %cst_35 = arith.constant 0.000000e+00 : f32
    %47 = vector.broadcast %cst_35 : f32 to vector<1x128xf32>
    %48 = vector.broadcast %46 : vector<1x128xf32> to vector<16x128xf32>
    %49 = arith.subf %18, %48 : vector<16x128xf32>
    %50 = arith.mulf %49, %49 : vector<16x128xf32>
    %cst_36 = arith.constant dense<0.000000e+00> : vector<128xf32>
    %51 = vector.multi_reduction <add>, %50, %cst_36 [0] : vector<16x128xf32> to vector<128xf32>
    %52 = vector.shape_cast %51 : vector<128xf32> to vector<1x128xf32>
    %53 = arith.addf %47, %52 : vector<1x128xf32>
    %54 = vector.broadcast %46 : vector<1x128xf32> to vector<16x128xf32>
    %55 = arith.subf %39, %54 : vector<16x128xf32>
    %56 = arith.mulf %55, %55 : vector<16x128xf32>
    %cst_37 = arith.constant dense<0.000000e+00> : vector<128xf32>
    %57 = vector.multi_reduction <add>, %56, %cst_37 [0] : vector<16x128xf32> to vector<128xf32>
    %58 = vector.shape_cast %57 : vector<128xf32> to vector<1x128xf32>
    %59 = arith.addf %53, %58 : vector<1x128xf32>
    %cst_38 = arith.constant dense<0.000000e+00> : vector<1x128xf32>
    %60 = tpu.matmul %59, %43, %cst_38 {dimension_numbers = #tpu.dot_dimension_numbers<[1], [0], [0], [1], [0, 0, 1, 1], [], []>} : vector<1x128xf32>, vector<128x128xf32>, vector<1x128xf32> -> vector<1x128xf32>
    %cst_39 = arith.constant 0.001953125 : f32
    %61 = vector.broadcast %cst_39 : f32 to vector<1x128xf32>
    %62 = arith.mulf %60, %61 : vector<1x128xf32>
    %c0_40 = arith.constant 0 : index
    %c0_41 = arith.constant 0 : index
    %63 = vector.load %arg3[%c0_40, %c0_41] : memref<1x128xf32, #tpu.memory_space<vmem>>, vector<1x128xf32>
    %cst_42 = arith.constant 9.99999974E-6 : f32
    %64 = vector.broadcast %cst_42 : f32 to vector<1x128xf32>
    %65 = arith.addf %62, %64 : vector<1x128xf32>
    %66 = math.rsqrt %65 : vector<1x128xf32>
    %67 = arith.mulf %63, %66 : vector<1x128xf32>
    %c0_43 = arith.constant 0 : index
    %c0_44 = arith.constant 0 : index
    %68 = vector.load %arg4[%c0_43, %c0_44] : memref<1x128xf32, #tpu.memory_space<vmem>>, vector<1x128xf32>
    %69 = arith.mulf %46, %67 : vector<1x128xf32>
    %70 = arith.subf %68, %69 : vector<1x128xf32>
    %71 = vector.broadcast %67 : vector<1x128xf32> to vector<16x128xf32>
    %72 = arith.mulf %18, %71 : vector<16x128xf32>
    %73 = vector.broadcast %70 : vector<1x128xf32> to vector<16x128xf32>
    %74 = arith.addf %72, %73 : vector<16x128xf32>
    %cst_45 = arith.constant 0.000000e+00 : f32
    %75 = vector.broadcast %cst_45 : f32 to vector<16x128xf32>
    %76 = arith.maximumf %74, %75 : vector<16x128xf32>
    %77 = arith.truncf %76 : vector<16x128xf32> to vector<16x128xbf16>
    %c0_46 = arith.constant 0 : index
    %c0_47 = arith.constant 0 : index
    %78 = vector.load %arg5[%c0_46, %c0_47] : memref<32x128xbf16, #tpu.memory_space<vmem>>, vector<16x128xbf16>
    tpu.vector_store %arg5[%c0_46, %c0_47], %77 {strides = array<i32>} : memref<32x128xbf16, #tpu.memory_space<vmem>>, vector<16x128xbf16>,
    %79 = vector.broadcast %67 : vector<1x128xf32> to vector<16x128xf32>
    %80 = arith.mulf %39, %79 : vector<16x128xf32>
    %81 = vector.broadcast %70 : vector<1x128xf32> to vector<16x128xf32>
    %82 = arith.addf %80, %81 : vector<16x128xf32>
    %cst_48 = arith.constant 0.000000e+00 : f32
    %83 = vector.broadcast %cst_48 : f32 to vector<16x128xf32>
    %84 = arith.maximumf %82, %83 : vector<16x128xf32>
    %85 = arith.truncf %84 : vector<16x128xf32> to vector<16x128xbf16>
    %c16 = arith.constant 16 : index
    %c0_49 = arith.constant 0 : index
    %86 = vector.load %arg5[%c16, %c0_49] : memref<32x128xbf16, #tpu.memory_space<vmem>>, vector<16x128xbf16>
    tpu.vector_store %arg5[%c16, %c0_49], %85 {strides = array<i32>} : memref<32x128xbf16, #tpu.memory_space<vmem>>, vector<16x128xbf16>,
    return
  }
}

module attributes {stable_mosaic.version = 11 : i64} {
  func.func @kernel(%arg0: memref<2x9x288xbf16, #tpu.memory_space<vmem>>, %arg1: memref<2x288x128xbf16, #tpu.memory_space<vmem>>, %arg2: memref<128x128xf32, #tpu.memory_space<vmem>>, %arg3: memref<1x128xf32, #tpu.memory_space<vmem>>, %arg4: memref<1x128xf32, #tpu.memory_space<vmem>>, %arg5: memref<16x128xbf16, #tpu.memory_space<vmem>>) attributes {dimension_semantics = [], scalar_prefetch = 0 : i64, scratch_operands = 0 : i64, tpu.core_type = #tpu.core_type<tc>} {
    %cst = arith.constant 0.000000e+00 : f32
    %0 = vector.broadcast %cst : f32 to vector<1x128xf32>
    %c0 = arith.constant 0 : index
    %c0_0 = arith.constant 0 : index
    %c0_1 = arith.constant 0 : index
    %1 = vector.load %arg0[%c0, %c0_0, %c0_1] : memref<2x9x288xbf16, #tpu.memory_space<vmem>>, vector<1x9x288xbf16>
    %2 = vector.shape_cast %1 : vector<1x9x288xbf16> to vector<9x288xbf16>
    %cst_2 = arith.constant 0.000000e+00 : f32
    %3 = vector.broadcast %cst_2 : f32 to vector<8x128xf32>
    %4 = vector.extract_strided_slice %2 {offsets = [0, 0], sizes = [8, 288], strides = [1, 1]} : vector<9x288xbf16> to vector<8x288xbf16>
    %c0_3 = arith.constant 0 : index
    %c0_4 = arith.constant 0 : index
    %c0_5 = arith.constant 0 : index
    %5 = vector.load %arg1[%c0_3, %c0_4, %c0_5] : memref<2x288x128xbf16, #tpu.memory_space<vmem>>, vector<1x288x128xbf16>
    %6 = vector.shape_cast %5 : vector<1x288x128xbf16> to vector<288x128xbf16>
    %cst_6 = arith.constant dense<0.000000e+00> : vector<8x128xf32>
    %7 = tpu.matmul %4, %6, %cst_6 {dimension_numbers = #tpu.dot_dimension_numbers<[1], [0], [0], [1], [0, 0, 1, 1], [], []>} : vector<8x288xbf16>, vector<288x128xbf16>, vector<8x128xf32> -> vector<8x128xf32>
    %8 = arith.addf %3, %7 : vector<8x128xf32>
    %9 = vector.extract_strided_slice %2 {offsets = [1, 0], sizes = [8, 288], strides = [1, 1]} : vector<9x288xbf16> to vector<8x288xbf16>
    %c1 = arith.constant 1 : index
    %c0_7 = arith.constant 0 : index
    %c0_8 = arith.constant 0 : index
    %10 = vector.load %arg1[%c1, %c0_7, %c0_8] : memref<2x288x128xbf16, #tpu.memory_space<vmem>>, vector<1x288x128xbf16>
    %11 = vector.shape_cast %10 : vector<1x288x128xbf16> to vector<288x128xbf16>
    %cst_9 = arith.constant dense<0.000000e+00> : vector<8x128xf32>
    %12 = tpu.matmul %9, %11, %cst_9 {dimension_numbers = #tpu.dot_dimension_numbers<[1], [0], [0], [1], [0, 0, 1, 1], [], []>} : vector<8x288xbf16>, vector<288x128xbf16>, vector<8x128xf32> -> vector<8x128xf32>
    %13 = arith.addf %8, %12 : vector<8x128xf32>
    %cst_10 = arith.constant dense<0.000000e+00> : vector<128xf32>
    %14 = vector.multi_reduction <add>, %13, %cst_10 [0] : vector<8x128xf32> to vector<128xf32>
    %15 = vector.shape_cast %14 : vector<128xf32> to vector<1x128xf32>
    %16 = arith.addf %0, %15 : vector<1x128xf32>
    %c1_11 = arith.constant 1 : index
    %c0_12 = arith.constant 0 : index
    %c0_13 = arith.constant 0 : index
    %17 = vector.load %arg0[%c1_11, %c0_12, %c0_13] : memref<2x9x288xbf16, #tpu.memory_space<vmem>>, vector<1x9x288xbf16>
    %18 = vector.shape_cast %17 : vector<1x9x288xbf16> to vector<9x288xbf16>
    %cst_14 = arith.constant 0.000000e+00 : f32
    %19 = vector.broadcast %cst_14 : f32 to vector<8x128xf32>
    %20 = vector.extract_strided_slice %18 {offsets = [0, 0], sizes = [8, 288], strides = [1, 1]} : vector<9x288xbf16> to vector<8x288xbf16>
    %c0_15 = arith.constant 0 : index
    %c0_16 = arith.constant 0 : index
    %c0_17 = arith.constant 0 : index
    %21 = vector.load %arg1[%c0_15, %c0_16, %c0_17] : memref<2x288x128xbf16, #tpu.memory_space<vmem>>, vector<1x288x128xbf16>
    %22 = vector.shape_cast %21 : vector<1x288x128xbf16> to vector<288x128xbf16>
    %cst_18 = arith.constant dense<0.000000e+00> : vector<8x128xf32>
    %23 = tpu.matmul %20, %22, %cst_18 {dimension_numbers = #tpu.dot_dimension_numbers<[1], [0], [0], [1], [0, 0, 1, 1], [], []>} : vector<8x288xbf16>, vector<288x128xbf16>, vector<8x128xf32> -> vector<8x128xf32>
    %24 = arith.addf %19, %23 : vector<8x128xf32>
    %25 = vector.extract_strided_slice %18 {offsets = [1, 0], sizes = [8, 288], strides = [1, 1]} : vector<9x288xbf16> to vector<8x288xbf16>
    %c1_19 = arith.constant 1 : index
    %c0_20 = arith.constant 0 : index
    %c0_21 = arith.constant 0 : index
    %26 = vector.load %arg1[%c1_19, %c0_20, %c0_21] : memref<2x288x128xbf16, #tpu.memory_space<vmem>>, vector<1x288x128xbf16>
    %27 = vector.shape_cast %26 : vector<1x288x128xbf16> to vector<288x128xbf16>
    %cst_22 = arith.constant dense<0.000000e+00> : vector<8x128xf32>
    %28 = tpu.matmul %25, %27, %cst_22 {dimension_numbers = #tpu.dot_dimension_numbers<[1], [0], [0], [1], [0, 0, 1, 1], [], []>} : vector<8x288xbf16>, vector<288x128xbf16>, vector<8x128xf32> -> vector<8x128xf32>
    %29 = arith.addf %24, %28 : vector<8x128xf32>
    %cst_23 = arith.constant dense<0.000000e+00> : vector<128xf32>
    %30 = vector.multi_reduction <add>, %29, %cst_23 [0] : vector<8x128xf32> to vector<128xf32>
    %31 = vector.shape_cast %30 : vector<128xf32> to vector<1x128xf32>
    %32 = arith.addf %16, %31 : vector<1x128xf32>
    %c0_24 = arith.constant 0 : index
    %c0_25 = arith.constant 0 : index
    %33 = vector.load %arg2[%c0_24, %c0_25] : memref<128x128xf32, #tpu.memory_space<vmem>>, vector<128x128xf32>
    %cst_26 = arith.constant dense<0.000000e+00> : vector<1x128xf32>
    %34 = tpu.matmul %32, %33, %cst_26 {dimension_numbers = #tpu.dot_dimension_numbers<[1], [0], [0], [1], [0, 0, 1, 1], [], []>} : vector<1x128xf32>, vector<128x128xf32>, vector<1x128xf32> -> vector<1x128xf32>
    %cst_27 = arith.constant 7.812500e-03 : f32
    %35 = vector.broadcast %cst_27 : f32 to vector<1x128xf32>
    %36 = arith.mulf %34, %35 : vector<1x128xf32>
    %cst_28 = arith.constant 0.000000e+00 : f32
    %37 = vector.broadcast %cst_28 : f32 to vector<1x128xf32>
    %38 = vector.broadcast %36 : vector<1x128xf32> to vector<8x128xf32>
    %39 = arith.subf %13, %38 : vector<8x128xf32>
    %40 = arith.mulf %39, %39 : vector<8x128xf32>
    %cst_29 = arith.constant dense<0.000000e+00> : vector<128xf32>
    %41 = vector.multi_reduction <add>, %40, %cst_29 [0] : vector<8x128xf32> to vector<128xf32>
    %42 = vector.shape_cast %41 : vector<128xf32> to vector<1x128xf32>
    %43 = arith.addf %37, %42 : vector<1x128xf32>
    %44 = vector.broadcast %36 : vector<1x128xf32> to vector<8x128xf32>
    %45 = arith.subf %29, %44 : vector<8x128xf32>
    %46 = arith.mulf %45, %45 : vector<8x128xf32>
    %cst_30 = arith.constant dense<0.000000e+00> : vector<128xf32>
    %47 = vector.multi_reduction <add>, %46, %cst_30 [0] : vector<8x128xf32> to vector<128xf32>
    %48 = vector.shape_cast %47 : vector<128xf32> to vector<1x128xf32>
    %49 = arith.addf %43, %48 : vector<1x128xf32>
    %cst_31 = arith.constant dense<0.000000e+00> : vector<1x128xf32>
    %50 = tpu.matmul %49, %33, %cst_31 {dimension_numbers = #tpu.dot_dimension_numbers<[1], [0], [0], [1], [0, 0, 1, 1], [], []>} : vector<1x128xf32>, vector<128x128xf32>, vector<1x128xf32> -> vector<1x128xf32>
    %cst_32 = arith.constant 7.812500e-03 : f32
    %51 = vector.broadcast %cst_32 : f32 to vector<1x128xf32>
    %52 = arith.mulf %50, %51 : vector<1x128xf32>
    %c0_33 = arith.constant 0 : index
    %c0_34 = arith.constant 0 : index
    %53 = vector.load %arg3[%c0_33, %c0_34] : memref<1x128xf32, #tpu.memory_space<vmem>>, vector<1x128xf32>
    %cst_35 = arith.constant 9.99999974E-6 : f32
    %54 = vector.broadcast %cst_35 : f32 to vector<1x128xf32>
    %55 = arith.addf %52, %54 : vector<1x128xf32>
    %56 = math.rsqrt %55 : vector<1x128xf32>
    %57 = arith.mulf %53, %56 : vector<1x128xf32>
    %c0_36 = arith.constant 0 : index
    %c0_37 = arith.constant 0 : index
    %58 = vector.load %arg4[%c0_36, %c0_37] : memref<1x128xf32, #tpu.memory_space<vmem>>, vector<1x128xf32>
    %59 = arith.mulf %36, %57 : vector<1x128xf32>
    %60 = arith.subf %58, %59 : vector<1x128xf32>
    %61 = vector.broadcast %57 : vector<1x128xf32> to vector<8x128xf32>
    %62 = arith.mulf %13, %61 : vector<8x128xf32>
    %63 = vector.broadcast %60 : vector<1x128xf32> to vector<8x128xf32>
    %64 = arith.addf %62, %63 : vector<8x128xf32>
    %cst_38 = arith.constant 0.000000e+00 : f32
    %65 = vector.broadcast %cst_38 : f32 to vector<8x128xf32>
    %66 = arith.maximumf %64, %65 : vector<8x128xf32>
    %67 = arith.truncf %66 : vector<8x128xf32> to vector<8x128xbf16>
    %c0_39 = arith.constant 0 : index
    %c0_40 = arith.constant 0 : index
    %68 = vector.load %arg5[%c0_39, %c0_40] : memref<16x128xbf16, #tpu.memory_space<vmem>>, vector<8x128xbf16>
    tpu.vector_store %arg5[%c0_39, %c0_40], %67 {strides = array<i32>} : memref<16x128xbf16, #tpu.memory_space<vmem>>, vector<8x128xbf16>,
    %69 = vector.broadcast %57 : vector<1x128xf32> to vector<8x128xf32>
    %70 = arith.mulf %29, %69 : vector<8x128xf32>
    %71 = vector.broadcast %60 : vector<1x128xf32> to vector<8x128xf32>
    %72 = arith.addf %70, %71 : vector<8x128xf32>
    %cst_41 = arith.constant 0.000000e+00 : f32
    %73 = vector.broadcast %cst_41 : f32 to vector<8x128xf32>
    %74 = arith.maximumf %72, %73 : vector<8x128xf32>
    %75 = arith.truncf %74 : vector<8x128xf32> to vector<8x128xbf16>
    %c8 = arith.constant 8 : index
    %c0_42 = arith.constant 0 : index
    %76 = vector.load %arg5[%c8, %c0_42] : memref<16x128xbf16, #tpu.memory_space<vmem>>, vector<8x128xbf16>
    tpu.vector_store %arg5[%c8, %c0_42], %75 {strides = array<i32>} : memref<16x128xbf16, #tpu.memory_space<vmem>>, vector<8x128xbf16>,
    return
  }
}

module attributes {stable_mosaic.version = 11 : i64} {
  func.func @kernel(%arg0: memref<2x5x320xbf16, #tpu.memory_space<vmem>>, %arg1: memref<2x320x128xbf16, #tpu.memory_space<vmem>>, %arg2: memref<128x128xf32, #tpu.memory_space<vmem>>, %arg3: memref<1x128xf32, #tpu.memory_space<vmem>>, %arg4: memref<1x128xf32, #tpu.memory_space<vmem>>, %arg5: memref<8x128xbf16, #tpu.memory_space<vmem>>) attributes {dimension_semantics = [], scalar_prefetch = 0 : i64, scratch_operands = 0 : i64, tpu.core_type = #tpu.core_type<tc>} {
    %cst = arith.constant 0.000000e+00 : f32
    %0 = vector.broadcast %cst : f32 to vector<1x128xf32>
    %c0 = arith.constant 0 : index
    %c0_0 = arith.constant 0 : index
    %c0_1 = arith.constant 0 : index
    %1 = vector.load %arg0[%c0, %c0_0, %c0_1] : memref<2x5x320xbf16, #tpu.memory_space<vmem>>, vector<1x5x320xbf16>
    %2 = vector.shape_cast %1 : vector<1x5x320xbf16> to vector<5x320xbf16>
    %cst_2 = arith.constant 0.000000e+00 : f32
    %3 = vector.broadcast %cst_2 : f32 to vector<4x128xf32>
    %4 = vector.extract_strided_slice %2 {offsets = [0, 0], sizes = [4, 320], strides = [1, 1]} : vector<5x320xbf16> to vector<4x320xbf16>
    %c0_3 = arith.constant 0 : index
    %c0_4 = arith.constant 0 : index
    %c0_5 = arith.constant 0 : index
    %5 = vector.load %arg1[%c0_3, %c0_4, %c0_5] : memref<2x320x128xbf16, #tpu.memory_space<vmem>>, vector<1x320x128xbf16>
    %6 = vector.shape_cast %5 : vector<1x320x128xbf16> to vector<320x128xbf16>
    %cst_6 = arith.constant dense<0.000000e+00> : vector<4x128xf32>
    %7 = tpu.matmul %4, %6, %cst_6 {dimension_numbers = #tpu.dot_dimension_numbers<[1], [0], [0], [1], [0, 0, 1, 1], [], []>} : vector<4x320xbf16>, vector<320x128xbf16>, vector<4x128xf32> -> vector<4x128xf32>
    %8 = arith.addf %3, %7 : vector<4x128xf32>
    %9 = vector.extract_strided_slice %2 {offsets = [1, 0], sizes = [4, 320], strides = [1, 1]} : vector<5x320xbf16> to vector<4x320xbf16>
    %c1 = arith.constant 1 : index
    %c0_7 = arith.constant 0 : index
    %c0_8 = arith.constant 0 : index
    %10 = vector.load %arg1[%c1, %c0_7, %c0_8] : memref<2x320x128xbf16, #tpu.memory_space<vmem>>, vector<1x320x128xbf16>
    %11 = vector.shape_cast %10 : vector<1x320x128xbf16> to vector<320x128xbf16>
    %cst_9 = arith.constant dense<0.000000e+00> : vector<4x128xf32>
    %12 = tpu.matmul %9, %11, %cst_9 {dimension_numbers = #tpu.dot_dimension_numbers<[1], [0], [0], [1], [0, 0, 1, 1], [], []>} : vector<4x320xbf16>, vector<320x128xbf16>, vector<4x128xf32> -> vector<4x128xf32>
    %13 = arith.addf %8, %12 : vector<4x128xf32>
    %cst_10 = arith.constant dense<0.000000e+00> : vector<128xf32>
    %14 = vector.multi_reduction <add>, %13, %cst_10 [0] : vector<4x128xf32> to vector<128xf32>
    %15 = vector.shape_cast %14 : vector<128xf32> to vector<1x128xf32>
    %16 = arith.addf %0, %15 : vector<1x128xf32>
    %c1_11 = arith.constant 1 : index
    %c0_12 = arith.constant 0 : index
    %c0_13 = arith.constant 0 : index
    %17 = vector.load %arg0[%c1_11, %c0_12, %c0_13] : memref<2x5x320xbf16, #tpu.memory_space<vmem>>, vector<1x5x320xbf16>
    %18 = vector.shape_cast %17 : vector<1x5x320xbf16> to vector<5x320xbf16>
    %cst_14 = arith.constant 0.000000e+00 : f32
    %19 = vector.broadcast %cst_14 : f32 to vector<4x128xf32>
    %20 = vector.extract_strided_slice %18 {offsets = [0, 0], sizes = [4, 320], strides = [1, 1]} : vector<5x320xbf16> to vector<4x320xbf16>
    %c0_15 = arith.constant 0 : index
    %c0_16 = arith.constant 0 : index
    %c0_17 = arith.constant 0 : index
    %21 = vector.load %arg1[%c0_15, %c0_16, %c0_17] : memref<2x320x128xbf16, #tpu.memory_space<vmem>>, vector<1x320x128xbf16>
    %22 = vector.shape_cast %21 : vector<1x320x128xbf16> to vector<320x128xbf16>
    %cst_18 = arith.constant dense<0.000000e+00> : vector<4x128xf32>
    %23 = tpu.matmul %20, %22, %cst_18 {dimension_numbers = #tpu.dot_dimension_numbers<[1], [0], [0], [1], [0, 0, 1, 1], [], []>} : vector<4x320xbf16>, vector<320x128xbf16>, vector<4x128xf32> -> vector<4x128xf32>
    %24 = arith.addf %19, %23 : vector<4x128xf32>
    %25 = vector.extract_strided_slice %18 {offsets = [1, 0], sizes = [4, 320], strides = [1, 1]} : vector<5x320xbf16> to vector<4x320xbf16>
    %c1_19 = arith.constant 1 : index
    %c0_20 = arith.constant 0 : index
    %c0_21 = arith.constant 0 : index
    %26 = vector.load %arg1[%c1_19, %c0_20, %c0_21] : memref<2x320x128xbf16, #tpu.memory_space<vmem>>, vector<1x320x128xbf16>
    %27 = vector.shape_cast %26 : vector<1x320x128xbf16> to vector<320x128xbf16>
    %cst_22 = arith.constant dense<0.000000e+00> : vector<4x128xf32>
    %28 = tpu.matmul %25, %27, %cst_22 {dimension_numbers = #tpu.dot_dimension_numbers<[1], [0], [0], [1], [0, 0, 1, 1], [], []>} : vector<4x320xbf16>, vector<320x128xbf16>, vector<4x128xf32> -> vector<4x128xf32>
    %29 = arith.addf %24, %28 : vector<4x128xf32>
    %cst_23 = arith.constant dense<0.000000e+00> : vector<128xf32>
    %30 = vector.multi_reduction <add>, %29, %cst_23 [0] : vector<4x128xf32> to vector<128xf32>
    %31 = vector.shape_cast %30 : vector<128xf32> to vector<1x128xf32>
    %32 = arith.addf %16, %31 : vector<1x128xf32>
    %c0_24 = arith.constant 0 : index
    %c0_25 = arith.constant 0 : index
    %33 = vector.load %arg2[%c0_24, %c0_25] : memref<128x128xf32, #tpu.memory_space<vmem>>, vector<128x128xf32>
    %cst_26 = arith.constant dense<0.000000e+00> : vector<1x128xf32>
    %34 = tpu.matmul %32, %33, %cst_26 {dimension_numbers = #tpu.dot_dimension_numbers<[1], [0], [0], [1], [0, 0, 1, 1], [], []>} : vector<1x128xf32>, vector<128x128xf32>, vector<1x128xf32> -> vector<1x128xf32>
    %cst_27 = arith.constant 3.125000e-02 : f32
    %35 = vector.broadcast %cst_27 : f32 to vector<1x128xf32>
    %36 = arith.mulf %34, %35 : vector<1x128xf32>
    %cst_28 = arith.constant 0.000000e+00 : f32
    %37 = vector.broadcast %cst_28 : f32 to vector<1x128xf32>
    %38 = vector.broadcast %36 : vector<1x128xf32> to vector<4x128xf32>
    %39 = arith.subf %13, %38 : vector<4x128xf32>
    %40 = arith.mulf %39, %39 : vector<4x128xf32>
    %cst_29 = arith.constant dense<0.000000e+00> : vector<128xf32>
    %41 = vector.multi_reduction <add>, %40, %cst_29 [0] : vector<4x128xf32> to vector<128xf32>
    %42 = vector.shape_cast %41 : vector<128xf32> to vector<1x128xf32>
    %43 = arith.addf %37, %42 : vector<1x128xf32>
    %44 = vector.broadcast %36 : vector<1x128xf32> to vector<4x128xf32>
    %45 = arith.subf %29, %44 : vector<4x128xf32>
    %46 = arith.mulf %45, %45 : vector<4x128xf32>
    %cst_30 = arith.constant dense<0.000000e+00> : vector<128xf32>
    %47 = vector.multi_reduction <add>, %46, %cst_30 [0] : vector<4x128xf32> to vector<128xf32>
    %48 = vector.shape_cast %47 : vector<128xf32> to vector<1x128xf32>
    %49 = arith.addf %43, %48 : vector<1x128xf32>
    %cst_31 = arith.constant dense<0.000000e+00> : vector<1x128xf32>
    %50 = tpu.matmul %49, %33, %cst_31 {dimension_numbers = #tpu.dot_dimension_numbers<[1], [0], [0], [1], [0, 0, 1, 1], [], []>} : vector<1x128xf32>, vector<128x128xf32>, vector<1x128xf32> -> vector<1x128xf32>
    %cst_32 = arith.constant 3.125000e-02 : f32
    %51 = vector.broadcast %cst_32 : f32 to vector<1x128xf32>
    %52 = arith.mulf %50, %51 : vector<1x128xf32>
    %c0_33 = arith.constant 0 : index
    %c0_34 = arith.constant 0 : index
    %53 = vector.load %arg3[%c0_33, %c0_34] : memref<1x128xf32, #tpu.memory_space<vmem>>, vector<1x128xf32>
    %cst_35 = arith.constant 9.99999974E-6 : f32
    %54 = vector.broadcast %cst_35 : f32 to vector<1x128xf32>
    %55 = arith.addf %52, %54 : vector<1x128xf32>
    %56 = math.rsqrt %55 : vector<1x128xf32>
    %57 = arith.mulf %53, %56 : vector<1x128xf32>
    %c0_36 = arith.constant 0 : index
    %c0_37 = arith.constant 0 : index
    %58 = vector.load %arg4[%c0_36, %c0_37] : memref<1x128xf32, #tpu.memory_space<vmem>>, vector<1x128xf32>
    %59 = arith.mulf %36, %57 : vector<1x128xf32>
    %60 = arith.subf %58, %59 : vector<1x128xf32>
    %61 = vector.broadcast %57 : vector<1x128xf32> to vector<4x128xf32>
    %62 = arith.mulf %13, %61 : vector<4x128xf32>
    %63 = vector.broadcast %60 : vector<1x128xf32> to vector<4x128xf32>
    %64 = arith.addf %62, %63 : vector<4x128xf32>
    %cst_38 = arith.constant 0.000000e+00 : f32
    %65 = vector.broadcast %cst_38 : f32 to vector<4x128xf32>
    %66 = arith.maximumf %64, %65 : vector<4x128xf32>
    %67 = arith.truncf %66 : vector<4x128xf32> to vector<4x128xbf16>
    %c0_39 = arith.constant 0 : index
    %c0_40 = arith.constant 0 : index
    %68 = vector.load %arg5[%c0_39, %c0_40] : memref<8x128xbf16, #tpu.memory_space<vmem>>, vector<4x128xbf16>
    tpu.vector_store %arg5[%c0_39, %c0_40], %67 {strides = array<i32>} : memref<8x128xbf16, #tpu.memory_space<vmem>>, vector<4x128xbf16>,
    %69 = vector.broadcast %57 : vector<1x128xf32> to vector<4x128xf32>
    %70 = arith.mulf %29, %69 : vector<4x128xf32>
    %71 = vector.broadcast %60 : vector<1x128xf32> to vector<4x128xf32>
    %72 = arith.addf %70, %71 : vector<4x128xf32>
    %cst_41 = arith.constant 0.000000e+00 : f32
    %73 = vector.broadcast %cst_41 : f32 to vector<4x128xf32>
    %74 = arith.maximumf %72, %73 : vector<4x128xf32>
    %75 = arith.truncf %74 : vector<4x128xf32> to vector<4x128xbf16>
    %c4 = arith.constant 4 : index
    %c0_42 = arith.constant 0 : index
    %76 = vector.load %arg5[%c4, %c0_42] : memref<8x128xbf16, #tpu.memory_space<vmem>>, vector<4x128xbf16>
    tpu.vector_store %arg5[%c4, %c0_42], %75 {strides = array<i32>} : memref<8x128xbf16, #tpu.memory_space<vmem>>, vector<4x128xbf16>,
    return
  }
}

</mosaic_0001>

<llo_original>
// kernel: _lambda_.3
$region0: #{_lambda_.3}
  #allocation0 [shape = 'u32[]', space=smem, size = 0x4, offset = 0x4, fixed_abs, tag = 'smem constant byte address 0x4 - core index']
  #allocation1 [shape = 'u32[144,128]{1,0:T(1,128)}', space=vmem, size = 0x12000, scoped, tag = 'internal scratch']
  %s0 = inlined_call_operand.vmem [shape: bf16[2,18,54], index: 0, kind: input, shape index: {}]
  %s1 = inlined_call_operand.vmem [shape: bf16[3,54,128], index: 1, kind: input, shape index: {}]
  %s2 = inlined_call_operand.vmem [shape: f32[128,128], index: 2, kind: input, shape index: {}]
  %s3 = inlined_call_operand.vmem [shape: f32[1,128], index: 3, kind: input, shape index: {}]
  %s4 = inlined_call_operand.vmem [shape: f32[1,128], index: 4, kind: input, shape index: {}]
  %s5 = inlined_call_operand.vmem [shape: bf16[32,128], index: 5, kind: output, shape index: {}]
  %s6 = sld [smem:[#allocation0]]
  $region30: #{_lambda_.3} parent=0
    _
  %s8 = ssub.s32 1, %s6
  %s9 = scalar_select 0, %s8, %s6
  // Predicated region
  $region2: #{_lambda_.3} parent=0 // pred_check
    _
  $region3: #{_lambda_.3} parent=0 // pred_check_branch
    %11 = sbr.rel (0) target = $region5
  $region4: #{_lambda_.3} parent=0 // pred_region
    _
  $region5: #{_lambda_.3} parent=0 // pred_fallthru
    _
  // Predicated region
  $region6: #{_lambda_.3} parent=0 // pred_check
    _
  $region7: #{_lambda_.3} parent=0 // pred_check_branch
    %13 = sbr.rel (0) target = $region9
  $region8: #{_lambda_.3} parent=0 // pred_region
    _
  $region9: #{_lambda_.3} parent=0 // pred_fallthru
    _
  // Predicated region
  $region10: #{_lambda_.3} parent=0 // pred_check
    _
  $region11: #{_lambda_.3} parent=0 // pred_check_branch
    %15 = sbr.rel (0) target = $region13
  $region12: #{_lambda_.3} parent=0 // pred_region
    _
  $region13: #{_lambda_.3} parent=0 // pred_fallthru
    _
  // Predicated region
  $region14: #{_lambda_.3} parent=0 // pred_check
    _
  $region15: #{_lambda_.3} parent=0 // pred_check_branch
    %17 = sbr.rel (0) target = $region17
  $region16: #{_lambda_.3} parent=0 // pred_region
    _
  $region17: #{_lambda_.3} parent=0 // pred_fallthru
    _
  // Predicated region
  $region18: #{_lambda_.3} parent=0 // pred_check
    _
  $region19: #{_lambda_.3} parent=0 // pred_check_branch
    %19 = sbr.rel (0) target = $region21
  $region20: #{_lambda_.3} parent=0 // pred_region
    _
  $region21: #{_lambda_.3} parent=0 // pred_fallthru
    _
  %v21 = vld [vmem:[%s0] sm:$0xf]
  %v22 = vld [vmem:[%s0 + $0x4] sm:$0xf]
  %v23 = vld [vmem:[%s0 + $0x8] sm:$0x1]
  %v24 = vld [vmem:[%s1] sm:$0xf]
  %v25 = vld [vmem:[%s1 + $0x4] sm:$0xf]
  %v26 = vld [vmem:[%s1 + $0x8] sm:$0xf]
  %v27 = vld [vmem:[%s1 + $0xc] sm:$0xf]
  %v28 = vld [vmem:[%s1 + $0x10] sm:$0xf]
  %v29 = vld [vmem:[%s1 + $0x14] sm:$0xf]
  %v30 = vld [vmem:[%s1 + $0x18] sm:$0x7]
  %s31 = scalar_lea.vmem %s1, 28
  %v32 = vld [vmem:[%s31] sm:$0xf]
  %v33 = vld [vmem:[%s31 + $0x4] sm:$0xf]
  %v34 = vld [vmem:[%s31 + $0x8] sm:$0xf]
  %v35 = vld [vmem:[%s31 + $0xc] sm:$0xf]
  %v36 = vld [vmem:[%s31 + $0x10] sm:$0xf]
  %v37 = vld [vmem:[%s31 + $0x14] sm:$0xf]
  %v38 = vld [vmem:[%s31 + $0x18] sm:$0x7]
  %v42 = vunpack.c.l.b16 %v21
  %v43 = vunpack.c.l.b16 %v22
  %v44 = vunpack.c.l.b16 %v23
  %v45 = vpack.c.b16 %v43, %v42
  %v46 = vpack.c.b16 %v44, %v44
  %vm47 = vsmask.f32 7424
  %v49 = vshrl.u32 %v45, 16
  %v51 = vshll.u32 %v45, 16
  %v53 = vrot.slane %v51, 1
  %v54 = vor.u32 %v49, %v53
  %v56 = vshll.u32 %v46, 16
  %v58 = vrot.slane %v56, 1
  %v59 = vsel %vm47, %v54, %v58
  %v67 = vunpack.c.l.b16 %v32
  %v68 = vunpack.c.l.b16 %v33
  %v69 = vunpack.c.l.b16 %v34
  %v70 = vunpack.c.l.b16 %v35
  %v71 = vunpack.c.l.b16 %v36
  %v72 = vunpack.c.l.b16 %v37
  %v73 = vunpack.c.l.b16 %v38
  %v74 = vpack.c.b16 %v68, %v67
  %v75 = vpack.c.b16 %v70, %v69
  %v76 = vpack.c.b16 %v72, %v71
  %v77 = vpack.c.b16 %v73, %v73
  %vm81 = vcmask 441344
  %v83 = vsel %vm81, %v59, 0
  %vm85 = vcmask 1042432
  %v87 = vsel %vm85, %v77, 0
  %89 = vmatprep.subr.bf16.mxu0 0
  %90 = vmatpush1.bf16.msra.mxu0 %v74
  %91 = vmatprep.subr.bf16.mxu0 0
  %92 = vmatpush1.bf16.msra.mxu0 %v75
  %93 = vmatprep.subr.bf16.mxu0 0
  %94 = vmatpush1.bf16.msra.mxu0 %v76
  %95 = vmatprep.subr.bf16.mxu0 0
  %96 = vmatpush1.bf16.msra.mxu0 %v87
  %97 = vmatprep.subr.bf16.mxu0 0
  %98 = vmatpush1.bf16.msra.mxu0 0
  %99 = vmatprep.subr.bf16.mxu0 0
  %100 = vmatpush1.bf16.msra.mxu0 0
  %101 = vmatprep.subr.bf16.mxu0 0
  %102 = vmatpush1.bf16.msra.mxu0 0
  %103 = vmatprep.subr.bf16.mxu0 0
  %104 = vmatpush1.bf16.msra.mxu0 0
  %105 = vmatprep.subr.bf16.mxu0 0
  %106 = vmatpush1.bf16.msra.mxu0 0
  %107 = vmatprep.subr.bf16.mxu0 0
  %108 = vmatpush1.bf16.msra.mxu0 0
  %109 = vmatprep.subr.bf16.mxu0 0
  %110 = vmatpush1.bf16.msra.mxu0 0
  %111 = vmatprep.subr.bf16.mxu0 0
  %112 = vmatpush1.bf16.msra.mxu0 0
  %113 = vmatprep.subr.bf16.mxu0 0
  %114 = vmatpush1.bf16.msra.mxu0 0
  %115 = vmatprep.subr.bf16.mxu0 0
  %116 = vmatpush1.bf16.msra.mxu0 0
  %117 = vmatprep.subr.bf16.mxu0 0
  %118 = vmatpush1.bf16.msra.mxu0 0
  %119 = vmatprep.subr.bf16.mxu0 0
  %120 = vmatpush1.bf16.msra.mxu0 0
  %121 = vmatprep.mubr.bf16.mxu0 0
  %122 = vmatmul.mubr.bf16.gmra.mrb[0].mxu0 %v83
  %v123 = vpop.f32.mrb[0].mxu0
  %v124 = vadd.f32 0.0, %v123
  %v125 = vpop.f32.mrb[0].mxu0
  %v126 = vpop.f32.mrb[0].mxu0
  %v127 = vadd.f32 0.0, %v126
  %v128 = vpop.f32.mrb[0].mxu0
  %129 = vdwg.mxu0
  %v137 = vunpack.c.l.b16 %v24
  %v138 = vunpack.c.l.b16 %v25
  %v139 = vunpack.c.l.b16 %v26
  %v140 = vunpack.c.l.b16 %v27
  %v141 = vunpack.c.l.b16 %v28
  %v142 = vunpack.c.l.b16 %v29
  %v143 = vunpack.c.l.b16 %v30
  %v144 = vpack.c.b16 %v138, %v137
  %v145 = vpack.c.b16 %v140, %v139
  %v146 = vpack.c.b16 %v142, %v141
  %v147 = vpack.c.b16 %v143, %v143
  %v151 = vsel %vm81, %v45, 0
  %v154 = vsel %vm85, %v147, 0
  %156 = vmatprep.subr.bf16.mxu0 0
  %157 = vmatpush1.bf16.msra.mxu0 %v144
  %158 = vmatprep.subr.bf16.mxu0 0
  %159 = vmatpush1.bf16.msra.mxu0 %v145
  %160 = vmatprep.subr.bf16.mxu0 0
  %161 = vmatpush1.bf16.msra.mxu0 %v146
  %162 = vmatprep.subr.bf16.mxu0 0
  %163 = vmatpush1.bf16.msra.mxu0 %v154
  %164 = vmatprep.subr.bf16.mxu0 0
  %165 = vmatpush1.bf16.msra.mxu0 0
  %166 = vmatprep.subr.bf16.mxu0 0
  %167 = vmatpush1.bf16.msra.mxu0 0
  %168 = vmatprep.subr.bf16.mxu0 0
  %169 = vmatpush1.bf16.msra.mxu0 0
  %170 = vmatprep.subr.bf16.mxu0 0
  %171 = vmatpush1.bf16.msra.mxu0 0
  %172 = vmatprep.subr.bf16.mxu0 0
  %173 = vmatpush1.bf16.msra.mxu0 0
  %174 = vmatprep.subr.bf16.mxu0 0
  %175 = vmatpush1.bf16.msra.mxu0 0
  %176 = vmatprep.subr.bf16.mxu0 0
  %177 = vmatpush1.bf16.msra.mxu0 0
  %178 = vmatprep.subr.bf16.mxu0 0
  %179 = vmatpush1.bf16.msra.mxu0 0
  %180 = vmatprep.subr.bf16.mxu0 0
  %181 = vmatpush1.bf16.msra.mxu0 0
  %182 = vmatprep.subr.bf16.mxu0 0
  %183 = vmatpush1.bf16.msra.mxu0 0
  %184 = vmatprep.subr.bf16.mxu0 0
  %185 = vmatpush1.bf16.msra.mxu0 0
  %186 = vmatprep.subr.bf16.mxu0 0
  %187 = vmatpush1.bf16.msra.mxu0 0
  %188 = vmatprep.mubr.bf16.mxu0 0
  %189 = vmatmul.mubr.bf16.gmra.mrb[0].mxu0 %v151
  %v190 = vpop.f32.mrb[0].mxu0
  %v191 = vadd.f32 %v124, %v190
  %v192 = vpop.f32.mrb[0].mxu0
  %v193 = vpop.f32.mrb[0].mxu0
  %v194 = vadd.f32 %v127, %v193
  %v195 = vpop.f32.mrb[0].mxu0
  %196 = vdwg.mxu0
  %s197 = scalar_lea.vmem %s1, 56
  %v198 = vld [vmem:[%s197] sm:$0xf]
  %v199 = vld [vmem:[%s197 + $0x4] sm:$0xf]
  %v200 = vld [vmem:[%s197 + $0x8] sm:$0xf]
  %v201 = vld [vmem:[%s197 + $0xc] sm:$0xf]
  %v202 = vld [vmem:[%s197 + $0x10] sm:$0xf]
  %v203 = vld [vmem:[%s197 + $0x14] sm:$0xf]
  %v204 = vld [vmem:[%s197 + $0x18] sm:$0x7]
  %vm205 = vcmask 1046528
  %v206 = vrot.slane %v45, 1
  %v207 = vrot.slane %v46, 1
  %v208 = vsel %vm205, %v206, %v207
  %v216 = vunpack.c.l.b16 %v198
  %v217 = vunpack.c.l.b16 %v199
  %v218 = vunpack.c.l.b16 %v200
  %v219 = vunpack.c.l.b16 %v201
  %v220 = vunpack.c.l.b16 %v202
  %v221 = vunpack.c.l.b16 %v203
  %v222 = vunpack.c.l.b16 %v204
  %v223 = vpack.c.b16 %v217, %v216
  %v224 = vpack.c.b16 %v219, %v218
  %v225 = vpack.c.b16 %v221, %v220
  %v226 = vpack.c.b16 %v222, %v222
  %v231 = vsel %vm81, %v208, 0
  %v234 = vsel %vm85, %v226, 0
  %236 = vmatprep.subr.bf16.mxu0 0
  %237 = vmatpush1.bf16.msra.mxu0 %v223
  %238 = vmatprep.subr.bf16.mxu0 0
  %239 = vmatpush1.bf16.msra.mxu0 %v224
  %240 = vmatprep.subr.bf16.mxu0 0
  %241 = vmatpush1.bf16.msra.mxu0 %v225
  %242 = vmatprep.subr.bf16.mxu0 0
  %243 = vmatpush1.bf16.msra.mxu0 %v234
  %244 = vmatprep.subr.bf16.mxu0 0
  %245 = vmatpush1.bf16.msra.mxu0 0
  %246 = vmatprep.subr.bf16.mxu0 0
  %247 = vmatpush1.bf16.msra.mxu0 0
  %248 = vmatprep.subr.bf16.mxu0 0
  %249 = vmatpush1.bf16.msra.mxu0 0
  %250 = vmatprep.subr.bf16.mxu0 0
  %251 = vmatpush1.bf16.msra.mxu0 0
  %252 = vmatprep.subr.bf16.mxu0 0
  %253 = vmatpush1.bf16.msra.mxu0 0
  %254 = vmatprep.subr.bf16.mxu0 0
  %255 = vmatpush1.bf16.msra.mxu0 0
  %256 = vmatprep.subr.bf16.mxu0 0
  %257 = vmatpush1.bf16.msra.mxu0 0
  %258 = vmatprep.subr.bf16.mxu0 0
  %259 = vmatpush1.bf16.msra.mxu0 0
  %260 = vmatprep.subr.bf16.mxu0 0
  %261 = vmatpush1.bf16.msra.mxu0 0
  %262 = vmatprep.subr.bf16.mxu0 0
  %263 = vmatpush1.bf16.msra.mxu0 0
  %264 = vmatprep.subr.bf16.mxu0 0
  %265 = vmatpush1.bf16.msra.mxu0 0
  %266 = vmatprep.subr.bf16.mxu0 0
  %267 = vmatpush1.bf16.msra.mxu0 0
  %268 = vmatprep.mubr.bf16.mxu0 0
  %269 = vmatmul.mubr.bf16.gmra.mrb[0].mxu0 %v231
  %v270 = vpop.f32.mrb[0].mxu0
  %v271 = vadd.f32 0.0, %v270
  %v272 = vpop.f32.mrb[0].mxu0
  %v273 = vpop.f32.mrb[0].mxu0
  %v274 = vadd.f32 0.0, %v273
  %v275 = vpop.f32.mrb[0].mxu0
  %276 = vdwg.mxu0
  %v277 = vadd.f32 %v191, %v271
  %v278 = vadd.f32 %v194, %v274
  %v279 = vadd.f32 %v277, %v278
  %v280 = vrot.slane %v279, 4
  %v281 = vadd.f32 %v279, %v280
  %v282 = vrot.slane %v281, 2
  %v283 = vadd.f32 %v281, %v282
  %v284 = vrot.slane %v283, 1
  %v285 = vadd.f32 %v283, %v284
  %v286 = vadd.f32 %v285, 0.0
  %s287 = scalar_lea.vmem %s0, 12
  %v288 = vld [vmem:[%s287] sm:$0xf]
  %v289 = vld [vmem:[%s287 + $0x4] sm:$0xf]
  %v290 = vld [vmem:[%s287 + $0x8] sm:$0x1]
  %v294 = vunpack.c.l.b16 %v288
  %v295 = vunpack.c.l.b16 %v289
  %v296 = vunpack.c.l.b16 %v290
  %v297 = vpack.c.b16 %v295, %v294
  %v298 = vpack.c.b16 %v296, %v296
  %v300 = vshrl.u32 %v297, 16
  %v302 = vshll.u32 %v297, 16
  %v304 = vrot.slane %v302, 1
  %v305 = vor.u32 %v300, %v304
  %v307 = vshll.u32 %v298, 16
  %v309 = vrot.slane %v307, 1
  %v310 = vsel %vm47, %v305, %v309
  %v312 = vsel %vm81, %v310, 0
  %314 = vmatprep.subr.bf16.mxu0 0
  %315 = vmatpush1.bf16.msra.mxu0 %v74
  %316 = vmatprep.subr.bf16.mxu0 0
  %317 = vmatpush1.bf16.msra.mxu0 %v75
  %318 = vmatprep.subr.bf16.mxu0 0
  %319 = vmatpush1.bf16.msra.mxu0 %v76
  %320 = vmatprep.subr.bf16.mxu0 0
  %321 = vmatpush1.bf16.msra.mxu0 %v87
  %322 = vmatprep.subr.bf16.mxu0 0
  %323 = vmatpush1.bf16.msra.mxu0 0
  %324 = vmatprep.subr.bf16.mxu0 0
  %325 = vmatpush1.bf16.msra.mxu0 0
  %326 = vmatprep.subr.bf16.mxu0 0
  %327 = vmatpush1.bf16.msra.mxu0 0
  %328 = vmatprep.subr.bf16.mxu0 0
  %329 = vmatpush1.bf16.msra.mxu0 0
  %330 = vmatprep.subr.bf16.mxu0 0
  %331 = vmatpush1.bf16.msra.mxu0 0
  %332 = vmatprep.subr.bf16.mxu0 0
  %333 = vmatpush1.bf16.msra.mxu0 0
  %334 = vmatprep.subr.bf16.mxu0 0
  %335 = vmatpush1.bf16.msra.mxu0 0
  %336 = vmatprep.subr.bf16.mxu0 0
  %337 = vmatpush1.bf16.msra.mxu0 0
  %338 = vmatprep.subr.bf16.mxu0 0
  %339 = vmatpush1.bf16.msra.mxu0 0
  %340 = vmatprep.subr.bf16.mxu0 0
  %341 = vmatpush1.bf16.msra.mxu0 0
  %342 = vmatprep.subr.bf16.mxu0 0
  %343 = vmatpush1.bf16.msra.mxu0 0
  %344 = vmatprep.subr.bf16.mxu0 0
  %345 = vmatpush1.bf16.msra.mxu0 0
  %346 = vmatprep.mubr.bf16.mxu0 0
  %347 = vmatmul.mubr.bf16.gmra.mrb[0].mxu0 %v312
  %v348 = vpop.f32.mrb[0].mxu0
  %v349 = vadd.f32 0.0, %v348
  %v350 = vpop.f32.mrb[0].mxu0
  %v351 = vpop.f32.mrb[0].mxu0
  %v352 = vadd.f32 0.0, %v351
  %v353 = vpop.f32.mrb[0].mxu0
  %354 = vdwg.mxu0
  %v355 = vsel %vm81, %v297, 0
  %357 = vmatprep.subr.bf16.mxu0 0
  %358 = vmatpush1.bf16.msra.mxu0 %v144
  %359 = vmatprep.subr.bf16.mxu0 0
  %360 = vmatpush1.bf16.msra.mxu0 %v145
  %361 = vmatprep.subr.bf16.mxu0 0
  %362 = vmatpush1.bf16.msra.mxu0 %v146
  %363 = vmatprep.subr.bf16.mxu0 0
  %364 = vmatpush1.bf16.msra.mxu0 %v154
  %365 = vmatprep.subr.bf16.mxu0 0
  %366 = vmatpush1.bf16.msra.mxu0 0
  %367 = vmatprep.subr.bf16.mxu0 0
  %368 = vmatpush1.bf16.msra.mxu0 0
  %369 = vmatprep.subr.bf16.mxu0 0
  %370 = vmatpush1.bf16.msra.mxu0 0
  %371 = vmatprep.subr.bf16.mxu0 0
  %372 = vmatpush1.bf16.msra.mxu0 0
  %373 = vmatprep.subr.bf16.mxu0 0
  %374 = vmatpush1.bf16.msra.mxu0 0
  %375 = vmatprep.subr.bf16.mxu0 0
  %376 = vmatpush1.bf16.msra.mxu0 0
  %377 = vmatprep.subr.bf16.mxu0 0
  %378 = vmatpush1.bf16.msra.mxu0 0
  %379 = vmatprep.subr.bf16.mxu0 0
  %380 = vmatpush1.bf16.msra.mxu0 0
  %381 = vmatprep.subr.bf16.mxu0 0
  %382 = vmatpush1.bf16.msra.mxu0 0
  %383 = vmatprep.subr.bf16.mxu0 0
  %384 = vmatpush1.bf16.msra.mxu0 0
  %385 = vmatprep.subr.bf16.mxu0 0
  %386 = vmatpush1.bf16.msra.mxu0 0
  %387 = vmatprep.subr.bf16.mxu0 0
  %388 = vmatpush1.bf16.msra.mxu0 0
  %389 = vmatprep.mubr.bf16.mxu0 0
  %390 = vmatmul.mubr.bf16.gmra.mrb[0].mxu0 %v355
  %v391 = vpop.f32.mrb[0].mxu0
  %v392 = vadd.f32 %v349, %v391
  %v393 = vpop.f32.mrb[0].mxu0
  %v394 = vpop.f32.mrb[0].mxu0
  %v395 = vadd.f32 %v352, %v394
  %v396 = vpop.f32.mrb[0].mxu0
  %397 = vdwg.mxu0
  %v398 = vrot.slane %v297, 1
  %v399 = vrot.slane %v298, 1
  %v400 = vsel %vm205, %v398, %v399
  %v402 = vsel %vm81, %v400, 0
  %404 = vmatprep.subr.bf16.mxu0 0
  %405 = vmatpush1.bf16.msra.mxu0 %v223
  %406 = vmatprep.subr.bf16.mxu0 0
  %407 = vmatpush1.bf16.msra.mxu0 %v224
  %408 = vmatprep.subr.bf16.mxu0 0
  %409 = vmatpush1.bf16.msra.mxu0 %v225
  %410 = vmatprep.subr.bf16.mxu0 0
  %411 = vmatpush1.bf16.msra.mxu0 %v234
  %412 = vmatprep.subr.bf16.mxu0 0
  %413 = vmatpush1.bf16.msra.mxu0 0
  %414 = vmatprep.subr.bf16.mxu0 0
  %415 = vmatpush1.bf16.msra.mxu0 0
  %416 = vmatprep.subr.bf16.mxu0 0
  %417 = vmatpush1.bf16.msra.mxu0 0
  %418 = vmatprep.subr.bf16.mxu0 0
  %419 = vmatpush1.bf16.msra.mxu0 0
  %420 = vmatprep.subr.bf16.mxu0 0
  %421 = vmatpush1.bf16.msra.mxu0 0
  %422 = vmatprep.subr.bf16.mxu0 0
  %423 = vmatpush1.bf16.msra.mxu0 0
  %424 = vmatprep.subr.bf16.mxu0 0
  %425 = vmatpush1.bf16.msra.mxu0 0
  %426 = vmatprep.subr.bf16.mxu0 0
  %427 = vmatpush1.bf16.msra.mxu0 0
  %428 = vmatprep.subr.bf16.mxu0 0
  %429 = vmatpush1.bf16.msra.mxu0 0
  %430 = vmatprep.subr.bf16.mxu0 0
  %431 = vmatpush1.bf16.msra.mxu0 0
  %432 = vmatprep.subr.bf16.mxu0 0
  %433 = vmatpush1.bf16.msra.mxu0 0
  %434 = vmatprep.subr.bf16.mxu0 0
  %435 = vmatpush1.bf16.msra.mxu0 0
  %436 = vmatprep.mubr.bf16.mxu0 0
  %437 = vmatmul.mubr.bf16.gmra.mrb[0].mxu0 %v402
  %v438 = vpop.f32.mrb[0].mxu0
  %v439 = vadd.f32 0.0, %v438
  %v440 = vpop.f32.mrb[0].mxu0
  %v441 = vpop.f32.mrb[0].mxu0
  %v442 = vadd.f32 0.0, %v441
  %v443 = vpop.f32.mrb[0].mxu0
  %444 = vdwg.mxu0
  %v445 = vadd.f32 %v392, %v439
  %v446 = vadd.f32 %v395, %v442
  %v447 = vadd.f32 %v445, %v446
  %v448 = vrot.slane %v447, 4
  %v449 = vadd.f32 %v447, %v448
  %v450 = vrot.slane %v449, 2
  %v451 = vadd.f32 %v449, %v450
  %v452 = vrot.slane %v451, 1
  %v453 = vadd.f32 %v451, %v452
  %v454 = vadd.f32 %v286, %v453
  %v455 = vld [vmem:[%s2] sm:$0xff]
  %v456 = vld [vmem:[%s2 + $0x8] sm:$0xff]
  %v457 = vld [vmem:[%s2 + $0x10] sm:$0xff]
  %v458 = vld [vmem:[%s2 + $0x18] sm:$0xff]
  %v459 = vld [vmem:[%s2 + $0x20] sm:$0xff]
  %v460 = vld [vmem:[%s2 + $0x28] sm:$0xff]
  %v461 = vld [vmem:[%s2 + $0x30] sm:$0xff]
  %v462 = vld [vmem:[%s2 + $0x38] sm:$0xff]
  %v463 = vld [vmem:[%s2 + $0x40] sm:$0xff]
  %v464 = vld [vmem:[%s2 + $0x48] sm:$0xff]
  %v465 = vld [vmem:[%s2 + $0x50] sm:$0xff]
  %v466 = vld [vmem:[%s2 + $0x58] sm:$0xff]
  %v467 = vld [vmem:[%s2 + $0x60] sm:$0xff]
  %v468 = vld [vmem:[%s2 + $0x68] sm:$0xff]
  %v469 = vld [vmem:[%s2 + $0x70] sm:$0xff]
  %v470 = vld [vmem:[%s2 + $0x78] sm:$0xff]
  %471 = vmatprep.subr.mxu0 0.0
  %472 = vmatpush1.msra.mxu0 %v455
  %473 = vmatprep.subr.mxu0 0.0
  %474 = vmatpush1.msra.mxu0 %v456
  %475 = vmatprep.subr.mxu0 0.0
  %476 = vmatpush1.msra.mxu0 %v457
  %477 = vmatprep.subr.mxu0 0.0
  %478 = vmatpush1.msra.mxu0 %v458
  %479 = vmatprep.subr.mxu0 0.0
  %480 = vmatpush1.msra.mxu0 %v459
  %481 = vmatprep.subr.mxu0 0.0
  %482 = vmatpush1.msra.mxu0 %v460
  %483 = vmatprep.subr.mxu0 0.0
  %484 = vmatpush1.msra.mxu0 %v461
  %485 = vmatprep.subr.mxu0 0.0
  %486 = vmatpush1.msra.mxu0 %v462
  %487 = vmatprep.subr.mxu0 0.0
  %488 = vmatpush1.msra.mxu0 %v463
  %489 = vmatprep.subr.mxu0 0.0
  %490 = vmatpush1.msra.mxu0 %v464
  %491 = vmatprep.subr.mxu0 0.0
  %492 = vmatpush1.msra.mxu0 %v465
  %493 = vmatprep.subr.mxu0 0.0
  %494 = vmatpush1.msra.mxu0 %v466
  %495 = vmatprep.subr.mxu0 0.0
  %496 = vmatpush1.msra.mxu0 %v467
  %497 = vmatprep.subr.mxu0 0.0
  %498 = vmatpush1.msra.mxu0 %v468
  %499 = vmatprep.subr.mxu0 0.0
  %500 = vmatpush1.msra.mxu0 %v469
  %501 = vmatprep.subr.mxu0 0.0
  %502 = vmatpush1.msra.mxu0 %v470
  %503 = vmatprep.subr.mxu0 0.0
  %504 = vmatpush1.msra.mxu0 0.0
  %505 = vmatprep.subr.mxu0 0.0
  %506 = vmatpush1.msra.mxu0 0.0
  %507 = vmatprep.subr.mxu0 0.0
  %508 = vmatpush1.msra.mxu0 0.0
  %509 = vmatprep.subr.mxu0 0.0
  %510 = vmatpush1.msra.mxu0 0.0
  %511 = vmatprep.subr.mxu0 0.0
  %512 = vmatpush1.msra.mxu0 0.0
  %513 = vmatprep.subr.mxu0 0.0
  %514 = vmatpush1.msra.mxu0 0.0
  %515 = vmatprep.subr.mxu0 0.0
  %516 = vmatpush1.msra.mxu0 0.0
  %517 = vmatprep.subr.mxu0 0.0
  %518 = vmatpush1.msra.mxu0 0.0
  %519 = vmatprep.subr.mxu0 0.0
  %520 = vmatpush1.msra.mxu0 0.0
  %521 = vmatprep.subr.mxu0 0.0
  %522 = vmatpush1.msra.mxu0 0.0
  %523 = vmatprep.subr.mxu0 0.0
  %524 = vmatpush1.msra.mxu0 0.0
  %525 = vmatprep.subr.mxu0 0.0
  %526 = vmatpush1.msra.mxu0 0.0
  %527 = vmatprep.subr.mxu0 0.0
  %528 = vmatpush1.msra.mxu0 0.0
  %529 = vmatprep.subr.mxu0 0.0
  %530 = vmatpush1.msra.mxu0 0.0
  %531 = vmatprep.subr.mxu0 0.0
  %532 = vmatpush1.msra.mxu0 0.0
  %533 = vmatprep.subr.mxu0 0.0
  %534 = vmatpush1.msra.mxu0 0.0
  %535 = vmatprep.mubr.f32.mxu0 0.0
  %536 = vmatmul.mubr.f32.gmra.mrb[0].mxu0 %v454
  %v537 = vpop.f32.mrb[0].mxu0
  %v538 = vadd.f32 0.0, %v537
  %v539 = vpop.f32.mrb[0].mxu0
  %540 = vdwg.mxu0
  %v541 = vmul.f32 %v538, 0.001953125
  %v542 = vlaneseq
  %v543 = vshrl.u32 %v542, 7
  %v544 = vsub.s32 0, %v543
  %v545 = vrot.slane %v541, %v544
  %v546 = vsub.f32 %v277, %v545
  %v547 = vsub.f32 %v278, %v545
  %v548 = vmul.f32 %v546, %v546
  %v549 = vmul.f32 %v547, %v547
  %v550 = vadd.f32 %v548, %v549
  %v551 = vrot.slane %v550, 4
  %v552 = vadd.f32 %v550, %v551
  %v553 = vrot.slane %v552, 2
  %v554 = vadd.f32 %v552, %v553
  %v555 = vrot.slane %v554, 1
  %v556 = vadd.f32 %v554, %v555
  %v557 = vadd.f32 %v556, 0.0
  %v558 = vsub.f32 %v445, %v545
  %v559 = vsub.f32 %v446, %v545
  %v560 = vmul.f32 %v558, %v558
  %v561 = vmul.f32 %v559, %v559
  %v562 = vadd.f32 %v560, %v561
  %v563 = vrot.slane %v562, 4
  %v564 = vadd.f32 %v562, %v563
  %v565 = vrot.slane %v564, 2
  %v566 = vadd.f32 %v564, %v565
  %v567 = vrot.slane %v566, 1
  %v568 = vadd.f32 %v566, %v567
  %v569 = vadd.f32 %v557, %v568
  %570 = vmatprep.subr.mxu0 0.0
  %571 = vmatpush1.msra.mxu0 %v455
  %572 = vmatprep.subr.mxu0 0.0
  %573 = vmatpush1.msra.mxu0 %v456
  %574 = vmatprep.subr.mxu0 0.0
  %575 = vmatpush1.msra.mxu0 %v457
  %576 = vmatprep.subr.mxu0 0.0
  %577 = vmatpush1.msra.mxu0 %v458
  %578 = vmatprep.subr.mxu0 0.0
  %579 = vmatpush1.msra.mxu0 %v459
  %580 = vmatprep.subr.mxu0 0.0
  %581 = vmatpush1.msra.mxu0 %v460
  %582 = vmatprep.subr.mxu0 0.0
  %583 = vmatpush1.msra.mxu0 %v461
  %584 = vmatprep.subr.mxu0 0.0
  %585 = vmatpush1.msra.mxu0 %v462
  %586 = vmatprep.subr.mxu0 0.0
  %587 = vmatpush1.msra.mxu0 %v463
  %588 = vmatprep.subr.mxu0 0.0
  %589 = vmatpush1.msra.mxu0 %v464
  %590 = vmatprep.subr.mxu0 0.0
  %591 = vmatpush1.msra.mxu0 %v465
  %592 = vmatprep.subr.mxu0 0.0
  %593 = vmatpush1.msra.mxu0 %v466
  %594 = vmatprep.subr.mxu0 0.0
  %595 = vmatpush1.msra.mxu0 %v467
  %596 = vmatprep.subr.mxu0 0.0
  %597 = vmatpush1.msra.mxu0 %v468
  %598 = vmatprep.subr.mxu0 0.0
  %599 = vmatpush1.msra.mxu0 %v469
  %600 = vmatprep.subr.mxu0 0.0
  %601 = vmatpush1.msra.mxu0 %v470
  %602 = vmatprep.subr.mxu0 0.0
  %603 = vmatpush1.msra.mxu0 0.0
  %604 = vmatprep.subr.mxu0 0.0
  %605 = vmatpush1.msra.mxu0 0.0
  %606 = vmatprep.subr.mxu0 0.0
  %607 = vmatpush1.msra.mxu0 0.0
  %608 = vmatprep.subr.mxu0 0.0
  %609 = vmatpush1.msra.mxu0 0.0
  %610 = vmatprep.subr.mxu0 0.0
  %611 = vmatpush1.msra.mxu0 0.0
  %612 = vmatprep.subr.mxu0 0.0
  %613 = vmatpush1.msra.mxu0 0.0
  %614 = vmatprep.subr.mxu0 0.0
  %615 = vmatpush1.msra.mxu0 0.0
  %616 = vmatprep.subr.mxu0 0.0
  %617 = vmatpush1.msra.mxu0 0.0
  %618 = vmatprep.subr.mxu0 0.0
  %619 = vmatpush1.msra.mxu0 0.0
  %620 = vmatprep.subr.mxu0 0.0
  %621 = vmatpush1.msra.mxu0 0.0
  %622 = vmatprep.subr.mxu0 0.0
  %623 = vmatpush1.msra.mxu0 0.0
  %624 = vmatprep.subr.mxu0 0.0
  %625 = vmatpush1.msra.mxu0 0.0
  %626 = vmatprep.subr.mxu0 0.0
  %627 = vmatpush1.msra.mxu0 0.0
  %628 = vmatprep.subr.mxu0 0.0
  %629 = vmatpush1.msra.mxu0 0.0
  %630 = vmatprep.subr.mxu0 0.0
  %631 = vmatpush1.msra.mxu0 0.0
  %632 = vmatprep.subr.mxu0 0.0
  %633 = vmatpush1.msra.mxu0 0.0
  %634 = vmatprep.mubr.f32.mxu0 0.0
  %635 = vmatmul.mubr.f32.gmra.mrb[0].mxu0 %v569
  %v636 = vpop.f32.mrb[0].mxu0
  %v637 = vadd.f32 0.0, %v636
  %v638 = vpop.f32.mrb[0].mxu0
  %639 = vdwg.mxu0
  %v640 = vmul.f32 %v637, 0.001953125
  %v641 = vld [vmem:[%s3] sm:$0x1]
  %v642 = vadd.f32 %v640, 1e-05
  %v643 = vrsqrt.pop %v642
  %v644 = vmul.f32 %v641, %v643
  %v645 = vld [vmem:[%s4] sm:$0x1]
  %v646 = vmul.f32 %v541, %v644
  %v647 = vsub.f32 %v645, %v646
  %v649 = vlaneseq
  %v650 = vshrl.u32 %v649, 7
  %v651 = vsub.s32 0, %v650
  %v652 = vrot.slane %v644, %v651
  %v654 = vmul.f32 %v277, %v652
  %v655 = vmul.f32 %v278, %v652
  %v657 = vlaneseq
  %v658 = vshrl.u32 %v657, 7
  %v659 = vsub.s32 0, %v658
  %v660 = vrot.slane %v647, %v659
  %v662 = vadd.f32 %v654, %v660
  %v663 = vadd.f32 %v655, %v660
  %v664 = vmax.f32 %v662, 0.0
  %v665 = vmax.f32 %v663, 0.0
  %v666 = vpack.c.bf16 %v665, %v664
  %v668 = vunpack.c.l.b16 %v666
  %v669 = vunpack.c.h.b16 %v666
  %v670 = vpack.c.b16 %v668, %v668
  %v671 = vpack.c.b16 %v669, %v669
  %674 = vst [vmem:[%s5] sm:$0xf] %v670
  %675 = vst [vmem:[%s5 + $0x4] sm:$0xf] %v671
  %v676 = vmul.f32 %v445, %v652
  %v677 = vmul.f32 %v446, %v652
  %v678 = vadd.f32 %v676, %v660
  %v679 = vadd.f32 %v677, %v660
  %v680 = vmax.f32 %v678, 0.0
  %v681 = vmax.f32 %v679, 0.0
  %v682 = vpack.c.bf16 %v681, %v680
  %v684 = vunpack.c.l.b16 %v682
  %v685 = vunpack.c.h.b16 %v682
  %v686 = vpack.c.b16 %v684, %v684
  %v687 = vpack.c.b16 %v685, %v685
  %690 = vst [vmem:[%s5 + $0x8] sm:$0xf] %v686
  %691 = vst [vmem:[%s5 + $0xc] sm:$0xf] %v687
  // Predicated region
  $region22: #{_lambda_.3} parent=0 // pred_check
    _
  $region23: #{_lambda_.3} parent=0 // pred_check_branch
    %693 = sbr.rel (0) target = $region25
  $region24: #{_lambda_.3} parent=0 // pred_region
    _
  $region25: #{_lambda_.3} parent=0 // pred_fallthru
    _
  // Predicated region
  $region26: #{_lambda_.3} parent=0 // pred_check
    _
  $region27: #{_lambda_.3} parent=0 // pred_check_branch
    %695 = sbr.rel (0) target = $region29
  $region28: #{_lambda_.3} parent=0 // pred_region
    _
  $region29: #{_lambda_.3} parent=0 // pred_fallthru
    _

// kernel: _lambda_.4
$region0: #{_lambda_.4}
  #allocation0 [shape = 'u32[]', space=smem, size = 0x4, offset = 0x4, fixed_abs, tag = 'smem constant byte address 0x4 - core index']
  #allocation1 [shape = 'u32[144,128]{1,0:T(1,128)}', space=vmem, size = 0x12000, scoped, tag = 'internal scratch']
  %s0 = inlined_call_operand.vmem [shape: bf16[2,9,288], index: 0, kind: input, shape index: {}]
  %s1 = inlined_call_operand.vmem [shape: bf16[2,288,128], index: 1, kind: input, shape index: {}]
  %s2 = inlined_call_operand.vmem [shape: f32[128,128], index: 2, kind: input, shape index: {}]
  %s3 = inlined_call_operand.vmem [shape: f32[1,128], index: 3, kind: input, shape index: {}]
  %s4 = inlined_call_operand.vmem [shape: f32[1,128], index: 4, kind: input, shape index: {}]
  %s5 = inlined_call_operand.vmem [shape: bf16[16,128], index: 5, kind: output, shape index: {}]
  %s6 = sld [smem:[#allocation0]]
  $region30: #{_lambda_.4} parent=0
    _
  %s8 = ssub.s32 1, %s6
  %s9 = scalar_select 0, %s8, %s6
  // Predicated region
  $region2: #{_lambda_.4} parent=0 // pred_check
    _
  $region3: #{_lambda_.4} parent=0 // pred_check_branch
    %11 = sbr.rel (0) target = $region5
  $region4: #{_lambda_.4} parent=0 // pred_region
    _
  $region5: #{_lambda_.4} parent=0 // pred_fallthru
    _
  // Predicated region
  $region6: #{_lambda_.4} parent=0 // pred_check
    _
  $region7: #{_lambda_.4} parent=0 // pred_check_branch
    %13 = sbr.rel (0) target = $region9
  $region8: #{_lambda_.4} parent=0 // pred_region
    _
  $region9: #{_lambda_.4} parent=0 // pred_fallthru
    _
  // Predicated region
  $region10: #{_lambda_.4} parent=0 // pred_check
    _
  $region11: #{_lambda_.4} parent=0 // pred_check_branch
    %15 = sbr.rel (0) target = $region13
  $region12: #{_lambda_.4} parent=0 // pred_region
    _
  $region13: #{_lambda_.4} parent=0 // pred_fallthru
    _
  // Predicated region
  $region14: #{_lambda_.4} parent=0 // pred_check
    _
  $region15: #{_lambda_.4} parent=0 // pred_check_branch
    %17 = sbr.rel (0) target = $region17
  $region16: #{_lambda_.4} parent=0 // pred_region
    _
  $region17: #{_lambda_.4} parent=0 // pred_fallthru
    _
  // Predicated region
  $region18: #{_lambda_.4} parent=0 // pred_check
    _
  $region19: #{_lambda_.4} parent=0 // pred_check_branch
    %19 = sbr.rel (0) target = $region21
  $region20: #{_lambda_.4} parent=0 // pred_region
    _
  $region21: #{_lambda_.4} parent=0 // pred_fallthru
    _
  %v21 = vld [vmem:[%s0] sm:$0xff]
  %v22 = vld [vmem:[%s0 + $0x8] sm:$0xf]
  %v23 = vld [vmem:[%s0 + $0xc] sm:$0x11]
  %v24 = vld [vmem:[%s0 + $0x14] sm:$0x1]
  %v25 = vld [vmem:[%s1] sm:$0xf]
  %v26 = vld [vmem:[%s1 + $0x4] sm:$0xf]
  %v27 = vld [vmem:[%s1 + $0x8] sm:$0xf]
  %v28 = vld [vmem:[%s1 + $0xc] sm:$0xf]
  %v29 = vld [vmem:[%s1 + $0x10] sm:$0xf]
  %v30 = vld [vmem:[%s1 + $0x14] sm:$0xf]
  %v31 = vld [vmem:[%s1 + $0x18] sm:$0xf]
  %v32 = vld [vmem:[%s1 + $0x1c] sm:$0xf]
  %v33 = vld [vmem:[%s1 + $0x20] sm:$0xf]
  %v34 = vld [vmem:[%s1 + $0x24] sm:$0xf]
  %v35 = vld [vmem:[%s1 + $0x28] sm:$0xf]
  %v36 = vld [vmem:[%s1 + $0x2c] sm:$0xf]
  %v37 = vld [vmem:[%s1 + $0x30] sm:$0xf]
  %v38 = vld [vmem:[%s1 + $0x34] sm:$0xf]
  %v39 = vld [vmem:[%s1 + $0x38] sm:$0xf]
  %v40 = vld [vmem:[%s1 + $0x3c] sm:$0xf]
  %v41 = vld [vmem:[%s1 + $0x40] sm:$0xf]
  %v42 = vld [vmem:[%s1 + $0x44] sm:$0xf]
  %v43 = vld [vmem:[%s1 + $0x48] sm:$0xf]
  %v44 = vld [vmem:[%s1 + $0x4c] sm:$0xf]
  %v45 = vld [vmem:[%s1 + $0x50] sm:$0xf]
  %v46 = vld [vmem:[%s1 + $0x54] sm:$0xf]
  %v47 = vld [vmem:[%s1 + $0x58] sm:$0xf]
  %v48 = vld [vmem:[%s1 + $0x5c] sm:$0xf]
  %v49 = vld [vmem:[%s1 + $0x60] sm:$0xf]
  %v50 = vld [vmem:[%s1 + $0x64] sm:$0xf]
  %v51 = vld [vmem:[%s1 + $0x68] sm:$0xf]
  %v52 = vld [vmem:[%s1 + $0x6c] sm:$0xf]
  %v53 = vld [vmem:[%s1 + $0x70] sm:$0xf]
  %v54 = vld [vmem:[%s1 + $0x74] sm:$0xf]
  %v55 = vld [vmem:[%s1 + $0x78] sm:$0xf]
  %v56 = vld [vmem:[%s1 + $0x7c] sm:$0xf]
  %v57 = vld [vmem:[%s1 + $0x80] sm:$0xf]
  %v58 = vld [vmem:[%s1 + $0x84] sm:$0xf]
  %v59 = vld [vmem:[%s1 + $0x88] sm:$0xf]
  %v60 = vld [vmem:[%s1 + $0x8c] sm:$0xf]
  %s61 = scalar_lea.vmem %s1, 144
  %v62 = vld [vmem:[%s61] sm:$0xf]
  %v63 = vld [vmem:[%s61 + $0x4] sm:$0xf]
  %v64 = vld [vmem:[%s61 + $0x8] sm:$0xf]
  %v65 = vld [vmem:[%s61 + $0xc] sm:$0xf]
  %v66 = vld [vmem:[%s61 + $0x10] sm:$0xf]
  %v67 = vld [vmem:[%s61 + $0x14] sm:$0xf]
  %v68 = vld [vmem:[%s61 + $0x18] sm:$0xf]
  %v69 = vld [vmem:[%s61 + $0x1c] sm:$0xf]
  %v70 = vld [vmem:[%s61 + $0x20] sm:$0xf]
  %v71 = vld [vmem:[%s61 + $0x24] sm:$0xf]
  %v72 = vld [vmem:[%s61 + $0x28] sm:$0xf]
  %v73 = vld [vmem:[%s61 + $0x2c] sm:$0xf]
  %v74 = vld [vmem:[%s61 + $0x30] sm:$0xf]
  %v75 = vld [vmem:[%s61 + $0x34] sm:$0xf]
  %v76 = vld [vmem:[%s61 + $0x38] sm:$0xf]
  %v77 = vld [vmem:[%s61 + $0x3c] sm:$0xf]
  %v78 = vld [vmem:[%s61 + $0x40] sm:$0xf]
  %v79 = vld [vmem:[%s61 + $0x44] sm:$0xf]
  %v80 = vld [vmem:[%s61 + $0x48] sm:$0xf]
  %v81 = vld [vmem:[%s61 + $0x4c] sm:$0xf]
  %v82 = vld [vmem:[%s61 + $0x50] sm:$0xf]
  %v83 = vld [vmem:[%s61 + $0x54] sm:$0xf]
  %v84 = vld [vmem:[%s61 + $0x58] sm:$0xf]
  %v85 = vld [vmem:[%s61 + $0x5c] sm:$0xf]
  %v86 = vld [vmem:[%s61 + $0x60] sm:$0xf]
  %v87 = vld [vmem:[%s61 + $0x64] sm:$0xf]
  %v88 = vld [vmem:[%s61 + $0x68] sm:$0xf]
  %v89 = vld [vmem:[%s61 + $0x6c] sm:$0xf]
  %v90 = vld [vmem:[%s61 + $0x70] sm:$0xf]
  %v91 = vld [vmem:[%s61 + $0x74] sm:$0xf]
  %v92 = vld [vmem:[%s61 + $0x78] sm:$0xf]
  %v93 = vld [vmem:[%s61 + $0x7c] sm:$0xf]
  %v94 = vld [vmem:[%s61 + $0x80] sm:$0xf]
  %v95 = vld [vmem:[%s61 + $0x84] sm:$0xf]
  %v96 = vld [vmem:[%s61 + $0x88] sm:$0xf]
  %v97 = vld [vmem:[%s61 + $0x8c] sm:$0xf]
  %v102 = vunpack.c.l.b16 %v21
  %v103 = vunpack.c.h.b16 %v21
  %v104 = vunpack.c.l.b16 %v22
  %v105 = vunpack.c.l.b16 %v23
  %v106 = vunpack.c.h.b16 %v23
  %v107 = vunpack.c.l.b16 %v24
  %v108 = vpack.c.b16 %v105, %v102
  %v109 = vpack.c.b16 %v106, %v103
  %v110 = vpack.c.b16 %v107, %v104
  %v112 = vshrl.u32 %v108, 16
  %v114 = vshll.u32 %v108, 16
  %v116 = vrot.slane %v114, 1
  %v117 = vor.u32 %v112, %v116
  %v119 = vshrl.u32 %v109, 16
  %v121 = vshll.u32 %v109, 16
  %v123 = vrot.slane %v121, 1
  %v124 = vor.u32 %v119, %v123
  %v126 = vshrl.u32 %v110, 16
  %v128 = vshll.u32 %v110, 16
  %v130 = vrot.slane %v128, 1
  %v131 = vor.u32 %v126, %v130
  %v170 = vunpack.c.l.b16 %v62
  %v171 = vunpack.c.l.b16 %v63
  %v172 = vunpack.c.l.b16 %v64
  %v173 = vunpack.c.l.b16 %v65
  %v174 = vunpack.c.l.b16 %v66
  %v175 = vunpack.c.l.b16 %v67
  %v176 = vunpack.c.l.b16 %v68
  %v177 = vunpack.c.l.b16 %v69
  %v178 = vunpack.c.l.b16 %v70
  %v179 = vunpack.c.l.b16 %v71
  %v180 = vunpack.c.l.b16 %v72
  %v181 = vunpack.c.l.b16 %v73
  %v182 = vunpack.c.l.b16 %v74
  %v183 = vunpack.c.l.b16 %v75
  %v184 = vunpack.c.l.b16 %v76
  %v185 = vunpack.c.l.b16 %v77
  %v186 = vunpack.c.l.b16 %v78
  %v187 = vunpack.c.l.b16 %v79
  %v188 = vunpack.c.l.b16 %v80
  %v189 = vunpack.c.l.b16 %v81
  %v190 = vunpack.c.l.b16 %v82
  %v191 = vunpack.c.l.b16 %v83
  %v192 = vunpack.c.l.b16 %v84
  %v193 = vunpack.c.l.b16 %v85
  %v194 = vunpack.c.l.b16 %v86
  %v195 = vunpack.c.l.b16 %v87
  %v196 = vunpack.c.l.b16 %v88
  %v197 = vunpack.c.l.b16 %v89
  %v198 = vunpack.c.l.b16 %v90
  %v199 = vunpack.c.l.b16 %v91
  %v200 = vunpack.c.l.b16 %v92
  %v201 = vunpack.c.l.b16 %v93
  %v202 = vunpack.c.l.b16 %v94
  %v203 = vunpack.c.l.b16 %v95
  %v204 = vunpack.c.l.b16 %v96
  %v205 = vunpack.c.l.b16 %v97
  %v206 = vpack.c.b16 %v171, %v170
  %v207 = vpack.c.b16 %v173, %v172
  %v208 = vpack.c.b16 %v175, %v174
  %v209 = vpack.c.b16 %v177, %v176
  %v210 = vpack.c.b16 %v179, %v178
  %v211 = vpack.c.b16 %v181, %v180
  %v212 = vpack.c.b16 %v183, %v182
  %v213 = vpack.c.b16 %v185, %v184
  %v214 = vpack.c.b16 %v187, %v186
  %v215 = vpack.c.b16 %v189, %v188
  %v216 = vpack.c.b16 %v191, %v190
  %v217 = vpack.c.b16 %v193, %v192
  %v218 = vpack.c.b16 %v195, %v194
  %v219 = vpack.c.b16 %v197, %v196
  %v220 = vpack.c.b16 %v199, %v198
  %v221 = vpack.c.b16 %v201, %v200
  %v222 = vpack.c.b16 %v203, %v202
  %v223 = vpack.c.b16 %v205, %v204
  %vm242 = vcmask 261120
  %v244 = vsel %vm242, %v131, 0
  %246 = vmatprep.subr.bf16.mxu0 0
  %247 = vmatpush1.bf16.msra.mxu0 %v206
  %248 = vmatprep.subr.bf16.mxu0 0
  %249 = vmatpush1.bf16.msra.mxu0 %v207
  %250 = vmatprep.subr.bf16.mxu0 0
  %251 = vmatpush1.bf16.msra.mxu0 %v208
  %252 = vmatprep.subr.bf16.mxu0 0
  %253 = vmatpush1.bf16.msra.mxu0 %v209
  %254 = vmatprep.subr.bf16.mxu0 0
  %255 = vmatpush1.bf16.msra.mxu0 %v210
  %256 = vmatprep.subr.bf16.mxu0 0
  %257 = vmatpush1.bf16.msra.mxu0 %v211
  %258 = vmatprep.subr.bf16.mxu0 0
  %259 = vmatpush1.bf16.msra.mxu0 %v212
  %260 = vmatprep.subr.bf16.mxu0 0
  %261 = vmatpush1.bf16.msra.mxu0 %v213
  %262 = vmatprep.subr.bf16.mxu0 0
  %263 = vmatpush1.bf16.msra.mxu0 %v214
  %264 = vmatprep.subr.bf16.mxu0 0
  %265 = vmatpush1.bf16.msra.mxu0 %v215
  %266 = vmatprep.subr.bf16.mxu0 0
  %267 = vmatpush1.bf16.msra.mxu0 %v216
  %268 = vmatprep.subr.bf16.mxu0 0
  %269 = vmatpush1.bf16.msra.mxu0 %v217
  %270 = vmatprep.subr.bf16.mxu0 0
  %271 = vmatpush1.bf16.msra.mxu0 %v218
  %272 = vmatprep.subr.bf16.mxu0 0
  %273 = vmatpush1.bf16.msra.mxu0 %v219
  %274 = vmatprep.subr.bf16.mxu0 0
  %275 = vmatpush1.bf16.msra.mxu0 %v220
  %276 = vmatprep.subr.bf16.mxu0 0
  %277 = vmatpush1.bf16.msra.mxu0 %v221
  %278 = vmatprep.mubr.bf16.mxu0 %v124
  %279 = vmatmul.mubr.bf16.gmra.mrb[0].mxu0 %v117
  %v280 = vpop.f32.mrb[0].mxu0
  %v281 = vadd.f32 0.0, %v280
  %v282 = vpop.f32.mrb[0].mxu0
  %v283 = vpop.f32.mrb[0].mxu0
  %v284 = vpop.f32.mrb[0].mxu0
  %285 = vdwg.mxu0
  %286 = vmatprep.subr.bf16.mxu0 0
  %287 = vmatpush1.bf16.msra.mxu0 %v222
  %288 = vmatprep.subr.bf16.mxu0 0
  %289 = vmatpush1.bf16.msra.mxu0 %v223
  %290 = vmatprep.subr.bf16.mxu0 0
  %291 = vmatpush1.bf16.msra.mxu0 0
  %292 = vmatprep.subr.bf16.mxu0 0
  %293 = vmatpush1.bf16.msra.mxu0 0
  %294 = vmatprep.subr.bf16.mxu0 0
  %295 = vmatpush1.bf16.msra.mxu0 0
  %296 = vmatprep.subr.bf16.mxu0 0
  %297 = vmatpush1.bf16.msra.mxu0 0
  %298 = vmatprep.subr.bf16.mxu0 0
  %299 = vmatpush1.bf16.msra.mxu0 0
  %300 = vmatprep.subr.bf16.mxu0 0
  %301 = vmatpush1.bf16.msra.mxu0 0
  %302 = vmatprep.subr.bf16.mxu0 0
  %303 = vmatpush1.bf16.msra.mxu0 0
  %304 = vmatprep.subr.bf16.mxu0 0
  %305 = vmatpush1.bf16.msra.mxu0 0
  %306 = vmatprep.subr.bf16.mxu0 0
  %307 = vmatpush1.bf16.msra.mxu0 0
  %308 = vmatprep.subr.bf16.mxu0 0
  %309 = vmatpush1.bf16.msra.mxu0 0
  %310 = vmatprep.subr.bf16.mxu0 0
  %311 = vmatpush1.bf16.msra.mxu0 0
  %312 = vmatprep.subr.bf16.mxu0 0
  %313 = vmatpush1.bf16.msra.mxu0 0
  %314 = vmatprep.subr.bf16.mxu0 0
  %315 = vmatpush1.bf16.msra.mxu0 0
  %316 = vmatprep.subr.bf16.mxu0 0
  %317 = vmatpush1.bf16.msra.mxu0 0
  %318 = vmatprep.mubr.bf16.mxu0 0
  %319 = vmatmul.mubr.bf16.gmra.mrb[0].mxu0 %v244
  %v320 = vpop.f32.mrb[0].mxu0
  %v321 = vadd.f32 %v281, %v320
  %v322 = vpop.f32.mrb[0].mxu0
  %v323 = vpop.f32.mrb[0].mxu0
  %v324 = vpop.f32.mrb[0].mxu0
  %325 = vdwg.mxu0
  %v326 = vpack.c.b16 %v102, %v102
  %v327 = vpack.c.b16 %v103, %v103
  %v328 = vpack.c.b16 %v104, %v104
  %v367 = vunpack.c.l.b16 %v25
  %v368 = vunpack.c.l.b16 %v26
  %v369 = vunpack.c.l.b16 %v27
  %v370 = vunpack.c.l.b16 %v28
  %v371 = vunpack.c.l.b16 %v29
  %v372 = vunpack.c.l.b16 %v30
  %v373 = vunpack.c.l.b16 %v31
  %v374 = vunpack.c.l.b16 %v32
  %v375 = vunpack.c.l.b16 %v33
  %v376 = vunpack.c.l.b16 %v34
  %v377 = vunpack.c.l.b16 %v35
  %v378 = vunpack.c.l.b16 %v36
  %v379 = vunpack.c.l.b16 %v37
  %v380 = vunpack.c.l.b16 %v38
  %v381 = vunpack.c.l.b16 %v39
  %v382 = vunpack.c.l.b16 %v40
  %v383 = vunpack.c.l.b16 %v41
  %v384 = vunpack.c.l.b16 %v42
  %v385 = vunpack.c.l.b16 %v43
  %v386 = vunpack.c.l.b16 %v44
  %v387 = vunpack.c.l.b16 %v45
  %v388 = vunpack.c.l.b16 %v46
  %v389 = vunpack.c.l.b16 %v47
  %v390 = vunpack.c.l.b16 %v48
  %v391 = vunpack.c.l.b16 %v49
  %v392 = vunpack.c.l.b16 %v50
  %v393 = vunpack.c.l.b16 %v51
  %v394 = vunpack.c.l.b16 %v52
  %v395 = vunpack.c.l.b16 %v53
  %v396 = vunpack.c.l.b16 %v54
  %v397 = vunpack.c.l.b16 %v55
  %v398 = vunpack.c.l.b16 %v56
  %v399 = vunpack.c.l.b16 %v57
  %v400 = vunpack.c.l.b16 %v58
  %v401 = vunpack.c.l.b16 %v59
  %v402 = vunpack.c.l.b16 %v60
  %v403 = vpack.c.b16 %v368, %v367
  %v404 = vpack.c.b16 %v370, %v369
  %v405 = vpack.c.b16 %v372, %v371
  %v406 = vpack.c.b16 %v374, %v373
  %v407 = vpack.c.b16 %v376, %v375
  %v408 = vpack.c.b16 %v378, %v377
  %v409 = vpack.c.b16 %v380, %v379
  %v410 = vpack.c.b16 %v382, %v381
  %v411 = vpack.c.b16 %v384, %v383
  %v412 = vpack.c.b16 %v386, %v385
  %v413 = vpack.c.b16 %v388, %v387
  %v414 = vpack.c.b16 %v390, %v389
  %v415 = vpack.c.b16 %v392, %v391
  %v416 = vpack.c.b16 %v394, %v393
  %v417 = vpack.c.b16 %v396, %v395
  %v418 = vpack.c.b16 %v398, %v397
  %v419 = vpack.c.b16 %v400, %v399
  %v420 = vpack.c.b16 %v402, %v401
  %v440 = vsel %vm242, %v328, 0
  %442 = vmatprep.subr.bf16.mxu0 0
  %443 = vmatpush1.bf16.msra.mxu0 %v403
  %444 = vmatprep.subr.bf16.mxu0 0
  %445 = vmatpush1.bf16.msra.mxu0 %v404
  %446 = vmatprep.subr.bf16.mxu0 0
  %447 = vmatpush1.bf16.msra.mxu0 %v405
  %448 = vmatprep.subr.bf16.mxu0 0
  %449 = vmatpush1.bf16.msra.mxu0 %v406
  %450 = vmatprep.subr.bf16.mxu0 0
  %451 = vmatpush1.bf16.msra.mxu0 %v407
  %452 = vmatprep.subr.bf16.mxu0 0
  %453 = vmatpush1.bf16.msra.mxu0 %v408
  %454 = vmatprep.subr.bf16.mxu0 0
  %455 = vmatpush1.bf16.msra.mxu0 %v409
  %456 = vmatprep.subr.bf16.mxu0 0
  %457 = vmatpush1.bf16.msra.mxu0 %v410
  %458 = vmatprep.subr.bf16.mxu0 0
  %459 = vmatpush1.bf16.msra.mxu0 %v411
  %460 = vmatprep.subr.bf16.mxu0 0
  %461 = vmatpush1.bf16.msra.mxu0 %v412
  %462 = vmatprep.subr.bf16.mxu0 0
  %463 = vmatpush1.bf16.msra.mxu0 %v413
  %464 = vmatprep.subr.bf16.mxu0 0
  %465 = vmatpush1.bf16.msra.mxu0 %v414
  %466 = vmatprep.subr.bf16.mxu0 0
  %467 = vmatpush1.bf16.msra.mxu0 %v415
  %468 = vmatprep.subr.bf16.mxu0 0
  %469 = vmatpush1.bf16.msra.mxu0 %v416
  %470 = vmatprep.subr.bf16.mxu0 0
  %471 = vmatpush1.bf16.msra.mxu0 %v417
  %472 = vmatprep.subr.bf16.mxu0 0
  %473 = vmatpush1.bf16.msra.mxu0 %v418
  %474 = vmatprep.mubr.bf16.mxu0 %v327
  %475 = vmatmul.mubr.bf16.gmra.mrb[0].mxu0 %v326
  %v476 = vpop.f32.mrb[0].mxu0
  %v477 = vadd.f32 %v321, %v476
  %v478 = vpop.f32.mrb[0].mxu0
  %v479 = vpop.f32.mrb[0].mxu0
  %v480 = vpop.f32.mrb[0].mxu0
  %481 = vdwg.mxu0
  %482 = vmatprep.subr.bf16.mxu0 0
  %483 = vmatpush1.bf16.msra.mxu0 %v419
  %484 = vmatprep.subr.bf16.mxu0 0
  %485 = vmatpush1.bf16.msra.mxu0 %v420
  %486 = vmatprep.subr.bf16.mxu0 0
  %487 = vmatpush1.bf16.msra.mxu0 0
  %488 = vmatprep.subr.bf16.mxu0 0
  %489 = vmatpush1.bf16.msra.mxu0 0
  %490 = vmatprep.subr.bf16.mxu0 0
  %491 = vmatpush1.bf16.msra.mxu0 0
  %492 = vmatprep.subr.bf16.mxu0 0
  %493 = vmatpush1.bf16.msra.mxu0 0
  %494 = vmatprep.subr.bf16.mxu0 0
  %495 = vmatpush1.bf16.msra.mxu0 0
  %496 = vmatprep.subr.bf16.mxu0 0
  %497 = vmatpush1.bf16.msra.mxu0 0
  %498 = vmatprep.subr.bf16.mxu0 0
  %499 = vmatpush1.bf16.msra.mxu0 0
  %500 = vmatprep.subr.bf16.mxu0 0
  %501 = vmatpush1.bf16.msra.mxu0 0
  %502 = vmatprep.subr.bf16.mxu0 0
  %503 = vmatpush1.bf16.msra.mxu0 0
  %504 = vmatprep.subr.bf16.mxu0 0
  %505 = vmatpush1.bf16.msra.mxu0 0
  %506 = vmatprep.subr.bf16.mxu0 0
  %507 = vmatpush1.bf16.msra.mxu0 0
  %508 = vmatprep.subr.bf16.mxu0 0
  %509 = vmatpush1.bf16.msra.mxu0 0
  %510 = vmatprep.subr.bf16.mxu0 0
  %511 = vmatpush1.bf16.msra.mxu0 0
  %512 = vmatprep.subr.bf16.mxu0 0
  %513 = vmatpush1.bf16.msra.mxu0 0
  %514 = vmatprep.mubr.bf16.mxu0 0
  %515 = vmatmul.mubr.bf16.gmra.mrb[0].mxu0 %v440
  %v516 = vpop.f32.mrb[0].mxu0
  %v517 = vadd.f32 %v477, %v516
  %v518 = vpop.f32.mrb[0].mxu0
  %v519 = vpop.f32.mrb[0].mxu0
  %v520 = vpop.f32.mrb[0].mxu0
  %521 = vdwg.mxu0
  %v522 = vrot.slane %v517, 4
  %v523 = vadd.f32 %v517, %v522
  %v524 = vrot.slane %v523, 2
  %v525 = vadd.f32 %v523, %v524
  %v526 = vrot.slane %v525, 1
  %v527 = vadd.f32 %v525, %v526
  %v528 = vadd.f32 %v527, 0.0
  %s529 = scalar_lea.vmem %s0, 24
  %v530 = vld [vmem:[%s529] sm:$0xff]
  %v531 = vld [vmem:[%s529 + $0x8] sm:$0xf]
  %v532 = vld [vmem:[%s529 + $0xc] sm:$0x11]
  %v533 = vld [vmem:[%s529 + $0x14] sm:$0x1]
  %v538 = vunpack.c.l.b16 %v530
  %v539 = vunpack.c.h.b16 %v530
  %v540 = vunpack.c.l.b16 %v531
  %v541 = vunpack.c.l.b16 %v532
  %v542 = vunpack.c.h.b16 %v532
  %v543 = vunpack.c.l.b16 %v533
  %v544 = vpack.c.b16 %v541, %v538
  %v545 = vpack.c.b16 %v542, %v539
  %v546 = vpack.c.b16 %v543, %v540
  %v548 = vshrl.u32 %v544, 16
  %v550 = vshll.u32 %v544, 16
  %v552 = vrot.slane %v550, 1
  %v553 = vor.u32 %v548, %v552
  %v555 = vshrl.u32 %v545, 16
  %v557 = vshll.u32 %v545, 16
  %v559 = vrot.slane %v557, 1
  %v560 = vor.u32 %v555, %v559
  %v562 = vshrl.u32 %v546, 16
  %v564 = vshll.u32 %v546, 16
  %v566 = vrot.slane %v564, 1
  %v567 = vor.u32 %v562, %v566
  %v571 = vsel %vm242, %v567, 0
  %573 = vmatprep.subr.bf16.mxu0 0
  %574 = vmatpush1.bf16.msra.mxu0 %v206
  %575 = vmatprep.subr.bf16.mxu0 0
  %576 = vmatpush1.bf16.msra.mxu0 %v207
  %577 = vmatprep.subr.bf16.mxu0 0
  %578 = vmatpush1.bf16.msra.mxu0 %v208
  %579 = vmatprep.subr.bf16.mxu0 0
  %580 = vmatpush1.bf16.msra.mxu0 %v209
  %581 = vmatprep.subr.bf16.mxu0 0
  %582 = vmatpush1.bf16.msra.mxu0 %v210
  %583 = vmatprep.subr.bf16.mxu0 0
  %584 = vmatpush1.bf16.msra.mxu0 %v211
  %585 = vmatprep.subr.bf16.mxu0 0
  %586 = vmatpush1.bf16.msra.mxu0 %v212
  %587 = vmatprep.subr.bf16.mxu0 0
  %588 = vmatpush1.bf16.msra.mxu0 %v213
  %589 = vmatprep.subr.bf16.mxu0 0
  %590 = vmatpush1.bf16.msra.mxu0 %v214
  %591 = vmatprep.subr.bf16.mxu0 0
  %592 = vmatpush1.bf16.msra.mxu0 %v215
  %593 = vmatprep.subr.bf16.mxu0 0
  %594 = vmatpush1.bf16.msra.mxu0 %v216
  %595 = vmatprep.subr.bf16.mxu0 0
  %596 = vmatpush1.bf16.msra.mxu0 %v217
  %597 = vmatprep.subr.bf16.mxu0 0
  %598 = vmatpush1.bf16.msra.mxu0 %v218
  %599 = vmatprep.subr.bf16.mxu0 0
  %600 = vmatpush1.bf16.msra.mxu0 %v219
  %601 = vmatprep.subr.bf16.mxu0 0
  %602 = vmatpush1.bf16.msra.mxu0 %v220
  %603 = vmatprep.subr.bf16.mxu0 0
  %604 = vmatpush1.bf16.msra.mxu0 %v221
  %605 = vmatprep.mubr.bf16.mxu0 %v560
  %606 = vmatmul.mubr.bf16.gmra.mrb[0].mxu0 %v553
  %v607 = vpop.f32.mrb[0].mxu0
  %v608 = vadd.f32 0.0, %v607
  %v609 = vpop.f32.mrb[0].mxu0
  %v610 = vpop.f32.mrb[0].mxu0
  %v611 = vpop.f32.mrb[0].mxu0
  %612 = vdwg.mxu0
  %613 = vmatprep.subr.bf16.mxu0 0
  %614 = vmatpush1.bf16.msra.mxu0 %v222
  %615 = vmatprep.subr.bf16.mxu0 0
  %616 = vmatpush1.bf16.msra.mxu0 %v223
  %617 = vmatprep.subr.bf16.mxu0 0
  %618 = vmatpush1.bf16.msra.mxu0 0
  %619 = vmatprep.subr.bf16.mxu0 0
  %620 = vmatpush1.bf16.msra.mxu0 0
  %621 = vmatprep.subr.bf16.mxu0 0
  %622 = vmatpush1.bf16.msra.mxu0 0
  %623 = vmatprep.subr.bf16.mxu0 0
  %624 = vmatpush1.bf16.msra.mxu0 0
  %625 = vmatprep.subr.bf16.mxu0 0
  %626 = vmatpush1.bf16.msra.mxu0 0
  %627 = vmatprep.subr.bf16.mxu0 0
  %628 = vmatpush1.bf16.msra.mxu0 0
  %629 = vmatprep.subr.bf16.mxu0 0
  %630 = vmatpush1.bf16.msra.mxu0 0
  %631 = vmatprep.subr.bf16.mxu0 0
  %632 = vmatpush1.bf16.msra.mxu0 0
  %633 = vmatprep.subr.bf16.mxu0 0
  %634 = vmatpush1.bf16.msra.mxu0 0
  %635 = vmatprep.subr.bf16.mxu0 0
  %636 = vmatpush1.bf16.msra.mxu0 0
  %637 = vmatprep.subr.bf16.mxu0 0
  %638 = vmatpush1.bf16.msra.mxu0 0
  %639 = vmatprep.subr.bf16.mxu0 0
  %640 = vmatpush1.bf16.msra.mxu0 0
  %641 = vmatprep.subr.bf16.mxu0 0
  %642 = vmatpush1.bf16.msra.mxu0 0
  %643 = vmatprep.subr.bf16.mxu0 0
  %644 = vmatpush1.bf16.msra.mxu0 0
  %645 = vmatprep.mubr.bf16.mxu0 0
  %646 = vmatmul.mubr.bf16.gmra.mrb[0].mxu0 %v571
  %v647 = vpop.f32.mrb[0].mxu0
  %v648 = vadd.f32 %v608, %v647
  %v649 = vpop.f32.mrb[0].mxu0
  %v650 = vpop.f32.mrb[0].mxu0
  %v651 = vpop.f32.mrb[0].mxu0
  %652 = vdwg.mxu0
  %v653 = vpack.c.b16 %v538, %v538
  %v654 = vpack.c.b16 %v539, %v539
  %v655 = vpack.c.b16 %v540, %v540
  %v659 = vsel %vm242, %v655, 0
  %661 = vmatprep.subr.bf16.mxu0 0
  %662 = vmatpush1.bf16.msra.mxu0 %v403
  %663 = vmatprep.subr.bf16.mxu0 0
  %664 = vmatpush1.bf16.msra.mxu0 %v404
  %665 = vmatprep.subr.bf16.mxu0 0
  %666 = vmatpush1.bf16.msra.mxu0 %v405
  %667 = vmatprep.subr.bf16.mxu0 0
  %668 = vmatpush1.bf16.msra.mxu0 %v406
  %669 = vmatprep.subr.bf16.mxu0 0
  %670 = vmatpush1.bf16.msra.mxu0 %v407
  %671 = vmatprep.subr.bf16.mxu0 0
  %672 = vmatpush1.bf16.msra.mxu0 %v408
  %673 = vmatprep.subr.bf16.mxu0 0
  %674 = vmatpush1.bf16.msra.mxu0 %v409
  %675 = vmatprep.subr.bf16.mxu0 0
  %676 = vmatpush1.bf16.msra.mxu0 %v410
  %677 = vmatprep.subr.bf16.mxu0 0
  %678 = vmatpush1.bf16.msra.mxu0 %v411
  %679 = vmatprep.subr.bf16.mxu0 0
  %680 = vmatpush1.bf16.msra.mxu0 %v412
  %681 = vmatprep.subr.bf16.mxu0 0
  %682 = vmatpush1.bf16.msra.mxu0 %v413
  %683 = vmatprep.subr.bf16.mxu0 0
  %684 = vmatpush1.bf16.msra.mxu0 %v414
  %685 = vmatprep.subr.bf16.mxu0 0
  %686 = vmatpush1.bf16.msra.mxu0 %v415
  %687 = vmatprep.subr.bf16.mxu0 0
  %688 = vmatpush1.bf16.msra.mxu0 %v416
  %689 = vmatprep.subr.bf16.mxu0 0
  %690 = vmatpush1.bf16.msra.mxu0 %v417
  %691 = vmatprep.subr.bf16.mxu0 0
  %692 = vmatpush1.bf16.msra.mxu0 %v418
  %693 = vmatprep.mubr.bf16.mxu0 %v654
  %694 = vmatmul.mubr.bf16.gmra.mrb[0].mxu0 %v653
  %v695 = vpop.f32.mrb[0].mxu0
  %v696 = vadd.f32 %v648, %v695
  %v697 = vpop.f32.mrb[0].mxu0
  %v698 = vpop.f32.mrb[0].mxu0
  %v699 = vpop.f32.mrb[0].mxu0
  %700 = vdwg.mxu0
  %701 = vmatprep.subr.bf16.mxu0 0
  %702 = vmatpush1.bf16.msra.mxu0 %v419
  %703 = vmatprep.subr.bf16.mxu0 0
  %704 = vmatpush1.bf16.msra.mxu0 %v420
  %705 = vmatprep.subr.bf16.mxu0 0
  %706 = vmatpush1.bf16.msra.mxu0 0
  %707 = vmatprep.subr.bf16.mxu0 0
  %708 = vmatpush1.bf16.msra.mxu0 0
  %709 = vmatprep.subr.bf16.mxu0 0
  %710 = vmatpush1.bf16.msra.mxu0 0
  %711 = vmatprep.subr.bf16.mxu0 0
  %712 = vmatpush1.bf16.msra.mxu0 0
  %713 = vmatprep.subr.bf16.mxu0 0
  %714 = vmatpush1.bf16.msra.mxu0 0
  %715 = vmatprep.subr.bf16.mxu0 0
  %716 = vmatpush1.bf16.msra.mxu0 0
  %717 = vmatprep.subr.bf16.mxu0 0
  %718 = vmatpush1.bf16.msra.mxu0 0
  %719 = vmatprep.subr.bf16.mxu0 0
  %720 = vmatpush1.bf16.msra.mxu0 0
  %721 = vmatprep.subr.bf16.mxu0 0
  %722 = vmatpush1.bf16.msra.mxu0 0
  %723 = vmatprep.subr.bf16.mxu0 0
  %724 = vmatpush1.bf16.msra.mxu0 0
  %725 = vmatprep.subr.bf16.mxu0 0
  %726 = vmatpush1.bf16.msra.mxu0 0
  %727 = vmatprep.subr.bf16.mxu0 0
  %728 = vmatpush1.bf16.msra.mxu0 0
  %729 = vmatprep.subr.bf16.mxu0 0
  %730 = vmatpush1.bf16.msra.mxu0 0
  %731 = vmatprep.subr.bf16.mxu0 0
  %732 = vmatpush1.bf16.msra.mxu0 0
  %733 = vmatprep.mubr.bf16.mxu0 0
  %734 = vmatmul.mubr.bf16.gmra.mrb[0].mxu0 %v659
  %v735 = vpop.f32.mrb[0].mxu0
  %v736 = vadd.f32 %v696, %v735
  %v737 = vpop.f32.mrb[0].mxu0
  %v738 = vpop.f32.mrb[0].mxu0
  %v739 = vpop.f32.mrb[0].mxu0
  %740 = vdwg.mxu0
  %v741 = vrot.slane %v736, 4
  %v742 = vadd.f32 %v736, %v741
  %v743 = vrot.slane %v742, 2
  %v744 = vadd.f32 %v742, %v743
  %v745 = vrot.slane %v744, 1
  %v746 = vadd.f32 %v744, %v745
  %v747 = vadd.f32 %v528, %v746
  %v748 = vld [vmem:[%s2] sm:$0xff]
  %v749 = vld [vmem:[%s2 + $0x8] sm:$0xff]
  %v750 = vld [vmem:[%s2 + $0x10] sm:$0xff]
  %v751 = vld [vmem:[%s2 + $0x18] sm:$0xff]
  %v752 = vld [vmem:[%s2 + $0x20] sm:$0xff]
  %v753 = vld [vmem:[%s2 + $0x28] sm:$0xff]
  %v754 = vld [vmem:[%s2 + $0x30] sm:$0xff]
  %v755 = vld [vmem:[%s2 + $0x38] sm:$0xff]
  %v756 = vld [vmem:[%s2 + $0x40] sm:$0xff]
  %v757 = vld [vmem:[%s2 + $0x48] sm:$0xff]
  %v758 = vld [vmem:[%s2 + $0x50] sm:$0xff]
  %v759 = vld [vmem:[%s2 + $0x58] sm:$0xff]
  %v760 = vld [vmem:[%s2 + $0x60] sm:$0xff]
  %v761 = vld [vmem:[%s2 + $0x68] sm:$0xff]
  %v762 = vld [vmem:[%s2 + $0x70] sm:$0xff]
  %v763 = vld [vmem:[%s2 + $0x78] sm:$0xff]
  %764 = vmatprep.subr.mxu0 0.0
  %765 = vmatpush1.msra.mxu0 %v748
  %766 = vmatprep.subr.mxu0 0.0
  %767 = vmatpush1.msra.mxu0 %v749
  %768 = vmatprep.subr.mxu0 0.0
  %769 = vmatpush1.msra.mxu0 %v750
  %770 = vmatprep.subr.mxu0 0.0
  %771 = vmatpush1.msra.mxu0 %v751
  %772 = vmatprep.subr.mxu0 0.0
  %773 = vmatpush1.msra.mxu0 %v752
  %774 = vmatprep.subr.mxu0 0.0
  %775 = vmatpush1.msra.mxu0 %v753
  %776 = vmatprep.subr.mxu0 0.0
  %777 = vmatpush1.msra.mxu0 %v754
  %778 = vmatprep.subr.mxu0 0.0
  %779 = vmatpush1.msra.mxu0 %v755
  %780 = vmatprep.subr.mxu0 0.0
  %781 = vmatpush1.msra.mxu0 %v756
  %782 = vmatprep.subr.mxu0 0.0
  %783 = vmatpush1.msra.mxu0 %v757
  %784 = vmatprep.subr.mxu0 0.0
  %785 = vmatpush1.msra.mxu0 %v758
  %786 = vmatprep.subr.mxu0 0.0
  %787 = vmatpush1.msra.mxu0 %v759
  %788 = vmatprep.subr.mxu0 0.0
  %789 = vmatpush1.msra.mxu0 %v760
  %790 = vmatprep.subr.mxu0 0.0
  %791 = vmatpush1.msra.mxu0 %v761
  %792 = vmatprep.subr.mxu0 0.0
  %793 = vmatpush1.msra.mxu0 %v762
  %794 = vmatprep.subr.mxu0 0.0
  %795 = vmatpush1.msra.mxu0 %v763
  %796 = vmatprep.subr.mxu0 0.0
  %797 = vmatpush1.msra.mxu0 0.0
  %798 = vmatprep.subr.mxu0 0.0
  %799 = vmatpush1.msra.mxu0 0.0
  %800 = vmatprep.subr.mxu0 0.0
  %801 = vmatpush1.msra.mxu0 0.0
  %802 = vmatprep.subr.mxu0 0.0
  %803 = vmatpush1.msra.mxu0 0.0
  %804 = vmatprep.subr.mxu0 0.0
  %805 = vmatpush1.msra.mxu0 0.0
  %806 = vmatprep.subr.mxu0 0.0
  %807 = vmatpush1.msra.mxu0 0.0
  %808 = vmatprep.subr.mxu0 0.0
  %809 = vmatpush1.msra.mxu0 0.0
  %810 = vmatprep.subr.mxu0 0.0
  %811 = vmatpush1.msra.mxu0 0.0
  %812 = vmatprep.subr.mxu0 0.0
  %813 = vmatpush1.msra.mxu0 0.0
  %814 = vmatprep.subr.mxu0 0.0
  %815 = vmatpush1.msra.mxu0 0.0
  %816 = vmatprep.subr.mxu0 0.0
  %817 = vmatpush1.msra.mxu0 0.0
  %818 = vmatprep.subr.mxu0 0.0
  %819 = vmatpush1.msra.mxu0 0.0
  %820 = vmatprep.subr.mxu0 0.0
  %821 = vmatpush1.msra.mxu0 0.0
  %822 = vmatprep.subr.mxu0 0.0
  %823 = vmatpush1.msra.mxu0 0.0
  %824 = vmatprep.subr.mxu0 0.0
  %825 = vmatpush1.msra.mxu0 0.0
  %826 = vmatprep.subr.mxu0 0.0
  %827 = vmatpush1.msra.mxu0 0.0
  %828 = vmatprep.mubr.f32.mxu0 0.0
  %829 = vmatmul.mubr.f32.gmra.mrb[0].mxu0 %v747
  %v830 = vpop.f32.mrb[0].mxu0
  %v831 = vadd.f32 0.0, %v830
  %v832 = vpop.f32.mrb[0].mxu0
  %833 = vdwg.mxu0
  %v834 = vmul.f32 %v831, 0.0078125
  %v835 = vlaneseq
  %v836 = vshrl.u32 %v835, 7
  %v837 = vsub.s32 0, %v836
  %v838 = vrot.slane %v834, %v837
  %v839 = vsub.f32 %v517, %v838
  %v840 = vmul.f32 %v839, %v839
  %v841 = vrot.slane %v840, 4
  %v842 = vadd.f32 %v840, %v841
  %v843 = vrot.slane %v842, 2
  %v844 = vadd.f32 %v842, %v843
  %v845 = vrot.slane %v844, 1
  %v846 = vadd.f32 %v844, %v845
  %v847 = vadd.f32 %v846, 0.0
  %v848 = vsub.f32 %v736, %v838
  %v849 = vmul.f32 %v848, %v848
  %v850 = vrot.slane %v849, 4
  %v851 = vadd.f32 %v849, %v850
  %v852 = vrot.slane %v851, 2
  %v853 = vadd.f32 %v851, %v852
  %v854 = vrot.slane %v853, 1
  %v855 = vadd.f32 %v853, %v854
  %v856 = vadd.f32 %v847, %v855
  %857 = vmatprep.subr.mxu0 0.0
  %858 = vmatpush1.msra.mxu0 %v748
  %859 = vmatprep.subr.mxu0 0.0
  %860 = vmatpush1.msra.mxu0 %v749
  %861 = vmatprep.subr.mxu0 0.0
  %862 = vmatpush1.msra.mxu0 %v750
  %863 = vmatprep.subr.mxu0 0.0
  %864 = vmatpush1.msra.mxu0 %v751
  %865 = vmatprep.subr.mxu0 0.0
  %866 = vmatpush1.msra.mxu0 %v752
  %867 = vmatprep.subr.mxu0 0.0
  %868 = vmatpush1.msra.mxu0 %v753
  %869 = vmatprep.subr.mxu0 0.0
  %870 = vmatpush1.msra.mxu0 %v754
  %871 = vmatprep.subr.mxu0 0.0
  %872 = vmatpush1.msra.mxu0 %v755
  %873 = vmatprep.subr.mxu0 0.0
  %874 = vmatpush1.msra.mxu0 %v756
  %875 = vmatprep.subr.mxu0 0.0
  %876 = vmatpush1.msra.mxu0 %v757
  %877 = vmatprep.subr.mxu0 0.0
  %878 = vmatpush1.msra.mxu0 %v758
  %879 = vmatprep.subr.mxu0 0.0
  %880 = vmatpush1.msra.mxu0 %v759
  %881 = vmatprep.subr.mxu0 0.0
  %882 = vmatpush1.msra.mxu0 %v760
  %883 = vmatprep.subr.mxu0 0.0
  %884 = vmatpush1.msra.mxu0 %v761
  %885 = vmatprep.subr.mxu0 0.0
  %886 = vmatpush1.msra.mxu0 %v762
  %887 = vmatprep.subr.mxu0 0.0
  %888 = vmatpush1.msra.mxu0 %v763
  %889 = vmatprep.subr.mxu0 0.0
  %890 = vmatpush1.msra.mxu0 0.0
  %891 = vmatprep.subr.mxu0 0.0
  %892 = vmatpush1.msra.mxu0 0.0
  %893 = vmatprep.subr.mxu0 0.0
  %894 = vmatpush1.msra.mxu0 0.0
  %895 = vmatprep.subr.mxu0 0.0
  %896 = vmatpush1.msra.mxu0 0.0
  %897 = vmatprep.subr.mxu0 0.0
  %898 = vmatpush1.msra.mxu0 0.0
  %899 = vmatprep.subr.mxu0 0.0
  %900 = vmatpush1.msra.mxu0 0.0
  %901 = vmatprep.subr.mxu0 0.0
  %902 = vmatpush1.msra.mxu0 0.0
  %903 = vmatprep.subr.mxu0 0.0
  %904 = vmatpush1.msra.mxu0 0.0
  %905 = vmatprep.subr.mxu0 0.0
  %906 = vmatpush1.msra.mxu0 0.0
  %907 = vmatprep.subr.mxu0 0.0
  %908 = vmatpush1.msra.mxu0 0.0
  %909 = vmatprep.subr.mxu0 0.0
  %910 = vmatpush1.msra.mxu0 0.0
  %911 = vmatprep.subr.mxu0 0.0
  %912 = vmatpush1.msra.mxu0 0.0
  %913 = vmatprep.subr.mxu0 0.0
  %914 = vmatpush1.msra.mxu0 0.0
  %915 = vmatprep.subr.mxu0 0.0
  %916 = vmatpush1.msra.mxu0 0.0
  %917 = vmatprep.subr.mxu0 0.0
  %918 = vmatpush1.msra.mxu0 0.0
  %919 = vmatprep.subr.mxu0 0.0
  %920 = vmatpush1.msra.mxu0 0.0
  %921 = vmatprep.mubr.f32.mxu0 0.0
  %922 = vmatmul.mubr.f32.gmra.mrb[0].mxu0 %v856
  %v923 = vpop.f32.mrb[0].mxu0
  %v924 = vadd.f32 0.0, %v923
  %v925 = vpop.f32.mrb[0].mxu0
  %926 = vdwg.mxu0
  %v927 = vmul.f32 %v924, 0.0078125
  %v928 = vld [vmem:[%s3] sm:$0x1]
  %v929 = vadd.f32 %v927, 1e-05
  %v930 = vrsqrt.pop %v929
  %v931 = vmul.f32 %v928, %v930
  %v932 = vld [vmem:[%s4] sm:$0x1]
  %v933 = vmul.f32 %v834, %v931
  %v934 = vsub.f32 %v932, %v933
  %v936 = vlaneseq
  %v937 = vshrl.u32 %v936, 7
  %v938 = vsub.s32 0, %v937
  %v939 = vrot.slane %v931, %v938
  %v941 = vmul.f32 %v517, %v939
  %v943 = vlaneseq
  %v944 = vshrl.u32 %v943, 7
  %v945 = vsub.s32 0, %v944
  %v946 = vrot.slane %v934, %v945
  %v948 = vadd.f32 %v941, %v946
  %v949 = vmax.f32 %v948, 0.0
  %v950 = vpack.c.bf16 %v949, %v949
  %951 = vst [vmem:[%s5] sm:$0xf] %v950
  %v952 = vmul.f32 %v736, %v939
  %v953 = vadd.f32 %v952, %v946
  %v954 = vmax.f32 %v953, 0.0
  %v955 = vpack.c.bf16 %v954, %v954
  %956 = vst [vmem:[%s5 + $0x4] sm:$0xf] %v955
  // Predicated region
  $region22: #{_lambda_.4} parent=0 // pred_check
    _
  $region23: #{_lambda_.4} parent=0 // pred_check_branch
    %958 = sbr.rel (0) target = $region25
  $region24: #{_lambda_.4} parent=0 // pred_region
    _
  $region25: #{_lambda_.4} parent=0 // pred_fallthru
    _
  // Predicated region
  $region26: #{_lambda_.4} parent=0 // pred_check
    _
  $region27: #{_lambda_.4} parent=0 // pred_check_branch
    %960 = sbr.rel (0) target = $region29
  $region28: #{_lambda_.4} parent=0 // pred_region
    _
  $region29: #{_lambda_.4} parent=0 // pred_fallthru
    _

// kernel: _lambda_.5
$region0: #{_lambda_.5}
  #allocation0 [shape = 'u32[]', space=smem, size = 0x4, offset = 0x4, fixed_abs, tag = 'smem constant byte address 0x4 - core index']
  #allocation1 [shape = 'u32[144,128]{1,0:T(1,128)}', space=vmem, size = 0x12000, scoped, tag = 'internal scratch']
  %s0 = inlined_call_operand.vmem [shape: bf16[2,5,320], index: 0, kind: input, shape index: {}]
  %s1 = inlined_call_operand.vmem [shape: bf16[2,320,128], index: 1, kind: input, shape index: {}]
  %s2 = inlined_call_operand.vmem [shape: f32[128,128], index: 2, kind: input, shape index: {}]
  %s3 = inlined_call_operand.vmem [shape: f32[1,128], index: 3, kind: input, shape index: {}]
  %s4 = inlined_call_operand.vmem [shape: f32[1,128], index: 4, kind: input, shape index: {}]
  %s5 = inlined_call_operand.vmem [shape: bf16[8,128], index: 5, kind: output, shape index: {}]
  %s6 = sld [smem:[#allocation0]]
  $region30: #{_lambda_.5} parent=0
    _
  %s8 = ssub.s32 1, %s6
  %s9 = scalar_select 0, %s8, %s6
  // Predicated region
  $region2: #{_lambda_.5} parent=0 // pred_check
    _
  $region3: #{_lambda_.5} parent=0 // pred_check_branch
    %11 = sbr.rel (0) target = $region5
  $region4: #{_lambda_.5} parent=0 // pred_region
    _
  $region5: #{_lambda_.5} parent=0 // pred_fallthru
    _
  // Predicated region
  $region6: #{_lambda_.5} parent=0 // pred_check
    _
  $region7: #{_lambda_.5} parent=0 // pred_check_branch
    %13 = sbr.rel (0) target = $region9
  $region8: #{_lambda_.5} parent=0 // pred_region
    _
  $region9: #{_lambda_.5} parent=0 // pred_fallthru
    _
  // Predicated region
  $region10: #{_lambda_.5} parent=0 // pred_check
    _
  $region11: #{_lambda_.5} parent=0 // pred_check_branch
    %15 = sbr.rel (0) target = $region13
  $region12: #{_lambda_.5} parent=0 // pred_region
    _
  $region13: #{_lambda_.5} parent=0 // pred_fallthru
    _
  // Predicated region
  $region14: #{_lambda_.5} parent=0 // pred_check
    _
  $region15: #{_lambda_.5} parent=0 // pred_check_branch
    %17 = sbr.rel (0) target = $region17
  $region16: #{_lambda_.5} parent=0 // pred_region
    _
  $region17: #{_lambda_.5} parent=0 // pred_fallthru
    _
  // Predicated region
  $region18: #{_lambda_.5} parent=0 // pred_check
    _
  $region19: #{_lambda_.5} parent=0 // pred_check_branch
    %19 = sbr.rel (0) target = $region21
  $region20: #{_lambda_.5} parent=0 // pred_region
    _
  $region21: #{_lambda_.5} parent=0 // pred_fallthru
    _
  %v21 = vld [vmem:[%s0] sm:$0x77]
  %v22 = vld [vmem:[%s0 + $0x8] sm:$0x7]
  %v23 = vld [vmem:[%s1] sm:$0xf]
  %v24 = vld [vmem:[%s1 + $0x4] sm:$0xf]
  %v25 = vld [vmem:[%s1 + $0x8] sm:$0xf]
  %v26 = vld [vmem:[%s1 + $0xc] sm:$0xf]
  %v27 = vld [vmem:[%s1 + $0x10] sm:$0xf]
  %v28 = vld [vmem:[%s1 + $0x14] sm:$0xf]
  %v29 = vld [vmem:[%s1 + $0x18] sm:$0xf]
  %v30 = vld [vmem:[%s1 + $0x1c] sm:$0xf]
  %v31 = vld [vmem:[%s1 + $0x20] sm:$0xf]
  %v32 = vld [vmem:[%s1 + $0x24] sm:$0xf]
  %v33 = vld [vmem:[%s1 + $0x28] sm:$0xf]
  %v34 = vld [vmem:[%s1 + $0x2c] sm:$0xf]
  %v35 = vld [vmem:[%s1 + $0x30] sm:$0xf]
  %v36 = vld [vmem:[%s1 + $0x34] sm:$0xf]
  %v37 = vld [vmem:[%s1 + $0x38] sm:$0xf]
  %v38 = vld [vmem:[%s1 + $0x3c] sm:$0xf]
  %v39 = vld [vmem:[%s1 + $0x40] sm:$0xf]
  %v40 = vld [vmem:[%s1 + $0x44] sm:$0xf]
  %v41 = vld [vmem:[%s1 + $0x48] sm:$0xf]
  %v42 = vld [vmem:[%s1 + $0x4c] sm:$0xf]
  %v43 = vld [vmem:[%s1 + $0x50] sm:$0xf]
  %v44 = vld [vmem:[%s1 + $0x54] sm:$0xf]
  %v45 = vld [vmem:[%s1 + $0x58] sm:$0xf]
  %v46 = vld [vmem:[%s1 + $0x5c] sm:$0xf]
  %v47 = vld [vmem:[%s1 + $0x60] sm:$0xf]
  %v48 = vld [vmem:[%s1 + $0x64] sm:$0xf]
  %v49 = vld [vmem:[%s1 + $0x68] sm:$0xf]
  %v50 = vld [vmem:[%s1 + $0x6c] sm:$0xf]
  %v51 = vld [vmem:[%s1 + $0x70] sm:$0xf]
  %v52 = vld [vmem:[%s1 + $0x74] sm:$0xf]
  %v53 = vld [vmem:[%s1 + $0x78] sm:$0xf]
  %v54 = vld [vmem:[%s1 + $0x7c] sm:$0xf]
  %v55 = vld [vmem:[%s1 + $0x80] sm:$0xf]
  %v56 = vld [vmem:[%s1 + $0x84] sm:$0xf]
  %v57 = vld [vmem:[%s1 + $0x88] sm:$0xf]
  %v58 = vld [vmem:[%s1 + $0x8c] sm:$0xf]
  %v59 = vld [vmem:[%s1 + $0x90] sm:$0xf]
  %v60 = vld [vmem:[%s1 + $0x94] sm:$0xf]
  %v61 = vld [vmem:[%s1 + $0x98] sm:$0xf]
  %v62 = vld [vmem:[%s1 + $0x9c] sm:$0xf]
  %s63 = scalar_lea.vmem %s1, 160
  %v64 = vld [vmem:[%s63] sm:$0xf]
  %v65 = vld [vmem:[%s63 + $0x4] sm:$0xf]
  %v66 = vld [vmem:[%s63 + $0x8] sm:$0xf]
  %v67 = vld [vmem:[%s63 + $0xc] sm:$0xf]
  %v68 = vld [vmem:[%s63 + $0x10] sm:$0xf]
  %v69 = vld [vmem:[%s63 + $0x14] sm:$0xf]
  %v70 = vld [vmem:[%s63 + $0x18] sm:$0xf]
  %v71 = vld [vmem:[%s63 + $0x1c] sm:$0xf]
  %v72 = vld [vmem:[%s63 + $0x20] sm:$0xf]
  %v73 = vld [vmem:[%s63 + $0x24] sm:$0xf]
  %v74 = vld [vmem:[%s63 + $0x28] sm:$0xf]
  %v75 = vld [vmem:[%s63 + $0x2c] sm:$0xf]
  %v76 = vld [vmem:[%s63 + $0x30] sm:$0xf]
  %v77 = vld [vmem:[%s63 + $0x34] sm:$0xf]
  %v78 = vld [vmem:[%s63 + $0x38] sm:$0xf]
  %v79 = vld [vmem:[%s63 + $0x3c] sm:$0xf]
  %v80 = vld [vmem:[%s63 + $0x40] sm:$0xf]
  %v81 = vld [vmem:[%s63 + $0x44] sm:$0xf]
  %v82 = vld [vmem:[%s63 + $0x48] sm:$0xf]
  %v83 = vld [vmem:[%s63 + $0x4c] sm:$0xf]
  %v84 = vld [vmem:[%s63 + $0x50] sm:$0xf]
  %v85 = vld [vmem:[%s63 + $0x54] sm:$0xf]
  %v86 = vld [vmem:[%s63 + $0x58] sm:$0xf]
  %v87 = vld [vmem:[%s63 + $0x5c] sm:$0xf]
  %v88 = vld [vmem:[%s63 + $0x60] sm:$0xf]
  %v89 = vld [vmem:[%s63 + $0x64] sm:$0xf]
  %v90 = vld [vmem:[%s63 + $0x68] sm:$0xf]
  %v91 = vld [vmem:[%s63 + $0x6c] sm:$0xf]
  %v92 = vld [vmem:[%s63 + $0x70] sm:$0xf]
  %v93 = vld [vmem:[%s63 + $0x74] sm:$0xf]
  %v94 = vld [vmem:[%s63 + $0x78] sm:$0xf]
  %v95 = vld [vmem:[%s63 + $0x7c] sm:$0xf]
  %v96 = vld [vmem:[%s63 + $0x80] sm:$0xf]
  %v97 = vld [vmem:[%s63 + $0x84] sm:$0xf]
  %v98 = vld [vmem:[%s63 + $0x88] sm:$0xf]
  %v99 = vld [vmem:[%s63 + $0x8c] sm:$0xf]
  %v100 = vld [vmem:[%s63 + $0x90] sm:$0xf]
  %v101 = vld [vmem:[%s63 + $0x94] sm:$0xf]
  %v102 = vld [vmem:[%s63 + $0x98] sm:$0xf]
  %v103 = vld [vmem:[%s63 + $0x9c] sm:$0xf]
  %v106 = vunpack.c.l.b16 %v21
  %v107 = vunpack.c.h.b16 %v21
  %v108 = vunpack.c.l.b16 %v22
  %v109 = vpack.c.b16 %v106, %v106
  %v110 = vpack.c.b16 %v107, %v107
  %v111 = vpack.c.b16 %v108, %v108
  %v113 = vshrl.u32 %v109, 16
  %v115 = vshll.u32 %v109, 16
  %v117 = vrot.slane %v115, 1
  %v118 = vor.u32 %v113, %v117
  %v120 = vshrl.u32 %v110, 16
  %v122 = vshll.u32 %v110, 16
  %v124 = vrot.slane %v122, 1
  %v125 = vor.u32 %v120, %v124
  %v127 = vshrl.u32 %v111, 16
  %v129 = vshll.u32 %v111, 16
  %v131 = vrot.slane %v129, 1
  %v132 = vor.u32 %v127, %v131
  %v175 = vunpack.c.l.b16 %v64
  %v176 = vunpack.c.l.b16 %v65
  %v177 = vunpack.c.l.b16 %v66
  %v178 = vunpack.c.l.b16 %v67
  %v179 = vunpack.c.l.b16 %v68
  %v180 = vunpack.c.l.b16 %v69
  %v181 = vunpack.c.l.b16 %v70
  %v182 = vunpack.c.l.b16 %v71
  %v183 = vunpack.c.l.b16 %v72
  %v184 = vunpack.c.l.b16 %v73
  %v185 = vunpack.c.l.b16 %v74
  %v186 = vunpack.c.l.b16 %v75
  %v187 = vunpack.c.l.b16 %v76
  %v188 = vunpack.c.l.b16 %v77
  %v189 = vunpack.c.l.b16 %v78
  %v190 = vunpack.c.l.b16 %v79
  %v191 = vunpack.c.l.b16 %v80
  %v192 = vunpack.c.l.b16 %v81
  %v193 = vunpack.c.l.b16 %v82
  %v194 = vunpack.c.l.b16 %v83
  %v195 = vunpack.c.l.b16 %v84
  %v196 = vunpack.c.l.b16 %v85
  %v197 = vunpack.c.l.b16 %v86
  %v198 = vunpack.c.l.b16 %v87
  %v199 = vunpack.c.l.b16 %v88
  %v200 = vunpack.c.l.b16 %v89
  %v201 = vunpack.c.l.b16 %v90
  %v202 = vunpack.c.l.b16 %v91
  %v203 = vunpack.c.l.b16 %v92
  %v204 = vunpack.c.l.b16 %v93
  %v205 = vunpack.c.l.b16 %v94
  %v206 = vunpack.c.l.b16 %v95
  %v207 = vunpack.c.l.b16 %v96
  %v208 = vunpack.c.l.b16 %v97
  %v209 = vunpack.c.l.b16 %v98
  %v210 = vunpack.c.l.b16 %v99
  %v211 = vunpack.c.l.b16 %v100
  %v212 = vunpack.c.l.b16 %v101
  %v213 = vunpack.c.l.b16 %v102
  %v214 = vunpack.c.l.b16 %v103
  %v215 = vpack.c.b16 %v176, %v175
  %v216 = vpack.c.b16 %v178, %v177
  %v217 = vpack.c.b16 %v180, %v179
  %v218 = vpack.c.b16 %v182, %v181
  %v219 = vpack.c.b16 %v184, %v183
  %v220 = vpack.c.b16 %v186, %v185
  %v221 = vpack.c.b16 %v188, %v187
  %v222 = vpack.c.b16 %v190, %v189
  %v223 = vpack.c.b16 %v192, %v191
  %v224 = vpack.c.b16 %v194, %v193
  %v225 = vpack.c.b16 %v196, %v195
  %v226 = vpack.c.b16 %v198, %v197
  %v227 = vpack.c.b16 %v200, %v199
  %v228 = vpack.c.b16 %v202, %v201
  %v229 = vpack.c.b16 %v204, %v203
  %v230 = vpack.c.b16 %v206, %v205
  %v231 = vpack.c.b16 %v208, %v207
  %v232 = vpack.c.b16 %v210, %v209
  %v233 = vpack.c.b16 %v212, %v211
  %v234 = vpack.c.b16 %v214, %v213
  %vm255 = vcmask 523264
  %v257 = vsel %vm255, %v132, 0
  %259 = vmatprep.subr.bf16.mxu0 0
  %260 = vmatpush1.bf16.msra.mxu0 %v215
  %261 = vmatprep.subr.bf16.mxu0 0
  %262 = vmatpush1.bf16.msra.mxu0 %v216
  %263 = vmatprep.subr.bf16.mxu0 0
  %264 = vmatpush1.bf16.msra.mxu0 %v217
  %265 = vmatprep.subr.bf16.mxu0 0
  %266 = vmatpush1.bf16.msra.mxu0 %v218
  %267 = vmatprep.subr.bf16.mxu0 0
  %268 = vmatpush1.bf16.msra.mxu0 %v219
  %269 = vmatprep.subr.bf16.mxu0 0
  %270 = vmatpush1.bf16.msra.mxu0 %v220
  %271 = vmatprep.subr.bf16.mxu0 0
  %272 = vmatpush1.bf16.msra.mxu0 %v221
  %273 = vmatprep.subr.bf16.mxu0 0
  %274 = vmatpush1.bf16.msra.mxu0 %v222
  %275 = vmatprep.subr.bf16.mxu0 0
  %276 = vmatpush1.bf16.msra.mxu0 %v223
  %277 = vmatprep.subr.bf16.mxu0 0
  %278 = vmatpush1.bf16.msra.mxu0 %v224
  %279 = vmatprep.subr.bf16.mxu0 0
  %280 = vmatpush1.bf16.msra.mxu0 %v225
  %281 = vmatprep.subr.bf16.mxu0 0
  %282 = vmatpush1.bf16.msra.mxu0 %v226
  %283 = vmatprep.subr.bf16.mxu0 0
  %284 = vmatpush1.bf16.msra.mxu0 %v227
  %285 = vmatprep.subr.bf16.mxu0 0
  %286 = vmatpush1.bf16.msra.mxu0 %v228
  %287 = vmatprep.subr.bf16.mxu0 0
  %288 = vmatpush1.bf16.msra.mxu0 %v229
  %289 = vmatprep.subr.bf16.mxu0 0
  %290 = vmatpush1.bf16.msra.mxu0 %v230
  %291 = vmatprep.mubr.bf16.mxu0 %v125
  %292 = vmatmul.mubr.bf16.gmra.mrb[0].mxu0 %v118
  %v293 = vpop.f32.mrb[0].mxu0
  %v294 = vadd.f32 0.0, %v293
  %v295 = vpop.f32.mrb[0].mxu0
  %v296 = vpop.f32.mrb[0].mxu0
  %v297 = vpop.f32.mrb[0].mxu0
  %298 = vdwg.mxu0
  %299 = vmatprep.subr.bf16.mxu0 0
  %300 = vmatpush1.bf16.msra.mxu0 %v231
  %301 = vmatprep.subr.bf16.mxu0 0
  %302 = vmatpush1.bf16.msra.mxu0 %v232
  %303 = vmatprep.subr.bf16.mxu0 0
  %304 = vmatpush1.bf16.msra.mxu0 %v233
  %305 = vmatprep.subr.bf16.mxu0 0
  %306 = vmatpush1.bf16.msra.mxu0 %v234
  %307 = vmatprep.subr.bf16.mxu0 0
  %308 = vmatpush1.bf16.msra.mxu0 0
  %309 = vmatprep.subr.bf16.mxu0 0
  %310 = vmatpush1.bf16.msra.mxu0 0
  %311 = vmatprep.subr.bf16.mxu0 0
  %312 = vmatpush1.bf16.msra.mxu0 0
  %313 = vmatprep.subr.bf16.mxu0 0
  %314 = vmatpush1.bf16.msra.mxu0 0
  %315 = vmatprep.subr.bf16.mxu0 0
  %316 = vmatpush1.bf16.msra.mxu0 0
  %317 = vmatprep.subr.bf16.mxu0 0
  %318 = vmatpush1.bf16.msra.mxu0 0
  %319 = vmatprep.subr.bf16.mxu0 0
  %320 = vmatpush1.bf16.msra.mxu0 0
  %321 = vmatprep.subr.bf16.mxu0 0
  %322 = vmatpush1.bf16.msra.mxu0 0
  %323 = vmatprep.subr.bf16.mxu0 0
  %324 = vmatpush1.bf16.msra.mxu0 0
  %325 = vmatprep.subr.bf16.mxu0 0
  %326 = vmatpush1.bf16.msra.mxu0 0
  %327 = vmatprep.subr.bf16.mxu0 0
  %328 = vmatpush1.bf16.msra.mxu0 0
  %329 = vmatprep.subr.bf16.mxu0 0
  %330 = vmatpush1.bf16.msra.mxu0 0
  %331 = vmatprep.mubr.bf16.mxu0 0
  %332 = vmatmul.mubr.bf16.gmra.mrb[0].mxu0 %v257
  %v333 = vpop.f32.mrb[0].mxu0
  %v334 = vadd.f32 %v294, %v333
  %v335 = vpop.f32.mrb[0].mxu0
  %v336 = vpop.f32.mrb[0].mxu0
  %v337 = vpop.f32.mrb[0].mxu0
  %338 = vdwg.mxu0
  %v381 = vunpack.c.l.b16 %v23
  %v382 = vunpack.c.l.b16 %v24
  %v383 = vunpack.c.l.b16 %v25
  %v384 = vunpack.c.l.b16 %v26
  %v385 = vunpack.c.l.b16 %v27
  %v386 = vunpack.c.l.b16 %v28
  %v387 = vunpack.c.l.b16 %v29
  %v388 = vunpack.c.l.b16 %v30
  %v389 = vunpack.c.l.b16 %v31
  %v390 = vunpack.c.l.b16 %v32
  %v391 = vunpack.c.l.b16 %v33
  %v392 = vunpack.c.l.b16 %v34
  %v393 = vunpack.c.l.b16 %v35
  %v394 = vunpack.c.l.b16 %v36
  %v395 = vunpack.c.l.b16 %v37
  %v396 = vunpack.c.l.b16 %v38
  %v397 = vunpack.c.l.b16 %v39
  %v398 = vunpack.c.l.b16 %v40
  %v399 = vunpack.c.l.b16 %v41
  %v400 = vunpack.c.l.b16 %v42
  %v401 = vunpack.c.l.b16 %v43
  %v402 = vunpack.c.l.b16 %v44
  %v403 = vunpack.c.l.b16 %v45
  %v404 = vunpack.c.l.b16 %v46
  %v405 = vunpack.c.l.b16 %v47
  %v406 = vunpack.c.l.b16 %v48
  %v407 = vunpack.c.l.b16 %v49
  %v408 = vunpack.c.l.b16 %v50
  %v409 = vunpack.c.l.b16 %v51
  %v410 = vunpack.c.l.b16 %v52
  %v411 = vunpack.c.l.b16 %v53
  %v412 = vunpack.c.l.b16 %v54
  %v413 = vunpack.c.l.b16 %v55
  %v414 = vunpack.c.l.b16 %v56
  %v415 = vunpack.c.l.b16 %v57
  %v416 = vunpack.c.l.b16 %v58
  %v417 = vunpack.c.l.b16 %v59
  %v418 = vunpack.c.l.b16 %v60
  %v419 = vunpack.c.l.b16 %v61
  %v420 = vunpack.c.l.b16 %v62
  %v421 = vpack.c.b16 %v382, %v381
  %v422 = vpack.c.b16 %v384, %v383
  %v423 = vpack.c.b16 %v386, %v385
  %v424 = vpack.c.b16 %v388, %v387
  %v425 = vpack.c.b16 %v390, %v389
  %v426 = vpack.c.b16 %v392, %v391
  %v427 = vpack.c.b16 %v394, %v393
  %v428 = vpack.c.b16 %v396, %v395
  %v429 = vpack.c.b16 %v398, %v397
  %v430 = vpack.c.b16 %v400, %v399
  %v431 = vpack.c.b16 %v402, %v401
  %v432 = vpack.c.b16 %v404, %v403
  %v433 = vpack.c.b16 %v406, %v405
  %v434 = vpack.c.b16 %v408, %v407
  %v435 = vpack.c.b16 %v410, %v409
  %v436 = vpack.c.b16 %v412, %v411
  %v437 = vpack.c.b16 %v414, %v413
  %v438 = vpack.c.b16 %v416, %v415
  %v439 = vpack.c.b16 %v418, %v417
  %v440 = vpack.c.b16 %v420, %v419
  %v461 = vsel %vm255, %v111, 0
  %463 = vmatprep.subr.bf16.mxu0 0
  %464 = vmatpush1.bf16.msra.mxu0 %v421
  %465 = vmatprep.subr.bf16.mxu0 0
  %466 = vmatpush1.bf16.msra.mxu0 %v422
  %467 = vmatprep.subr.bf16.mxu0 0
  %468 = vmatpush1.bf16.msra.mxu0 %v423
  %469 = vmatprep.subr.bf16.mxu0 0
  %470 = vmatpush1.bf16.msra.mxu0 %v424
  %471 = vmatprep.subr.bf16.mxu0 0
  %472 = vmatpush1.bf16.msra.mxu0 %v425
  %473 = vmatprep.subr.bf16.mxu0 0
  %474 = vmatpush1.bf16.msra.mxu0 %v426
  %475 = vmatprep.subr.bf16.mxu0 0
  %476 = vmatpush1.bf16.msra.mxu0 %v427
  %477 = vmatprep.subr.bf16.mxu0 0
  %478 = vmatpush1.bf16.msra.mxu0 %v428
  %479 = vmatprep.subr.bf16.mxu0 0
  %480 = vmatpush1.bf16.msra.mxu0 %v429
  %481 = vmatprep.subr.bf16.mxu0 0
  %482 = vmatpush1.bf16.msra.mxu0 %v430
  %483 = vmatprep.subr.bf16.mxu0 0
  %484 = vmatpush1.bf16.msra.mxu0 %v431
  %485 = vmatprep.subr.bf16.mxu0 0
  %486 = vmatpush1.bf16.msra.mxu0 %v432
  %487 = vmatprep.subr.bf16.mxu0 0
  %488 = vmatpush1.bf16.msra.mxu0 %v433
  %489 = vmatprep.subr.bf16.mxu0 0
  %490 = vmatpush1.bf16.msra.mxu0 %v434
  %491 = vmatprep.subr.bf16.mxu0 0
  %492 = vmatpush1.bf16.msra.mxu0 %v435
  %493 = vmatprep.subr.bf16.mxu0 0
  %494 = vmatpush1.bf16.msra.mxu0 %v436
  %495 = vmatprep.mubr.bf16.mxu0 %v110
  %496 = vmatmul.mubr.bf16.gmra.mrb[0].mxu0 %v109
  %v497 = vpop.f32.mrb[0].mxu0
  %v498 = vadd.f32 %v334, %v497
  %v499 = vpop.f32.mrb[0].mxu0
  %v500 = vpop.f32.mrb[0].mxu0
  %v501 = vpop.f32.mrb[0].mxu0
  %502 = vdwg.mxu0
  %503 = vmatprep.subr.bf16.mxu0 0
  %504 = vmatpush1.bf16.msra.mxu0 %v437
  %505 = vmatprep.subr.bf16.mxu0 0
  %506 = vmatpush1.bf16.msra.mxu0 %v438
  %507 = vmatprep.subr.bf16.mxu0 0
  %508 = vmatpush1.bf16.msra.mxu0 %v439
  %509 = vmatprep.subr.bf16.mxu0 0
  %510 = vmatpush1.bf16.msra.mxu0 %v440
  %511 = vmatprep.subr.bf16.mxu0 0
  %512 = vmatpush1.bf16.msra.mxu0 0
  %513 = vmatprep.subr.bf16.mxu0 0
  %514 = vmatpush1.bf16.msra.mxu0 0
  %515 = vmatprep.subr.bf16.mxu0 0
  %516 = vmatpush1.bf16.msra.mxu0 0
  %517 = vmatprep.subr.bf16.mxu0 0
  %518 = vmatpush1.bf16.msra.mxu0 0
  %519 = vmatprep.subr.bf16.mxu0 0
  %520 = vmatpush1.bf16.msra.mxu0 0
  %521 = vmatprep.subr.bf16.mxu0 0
  %522 = vmatpush1.bf16.msra.mxu0 0
  %523 = vmatprep.subr.bf16.mxu0 0
  %524 = vmatpush1.bf16.msra.mxu0 0
  %525 = vmatprep.subr.bf16.mxu0 0
  %526 = vmatpush1.bf16.msra.mxu0 0
  %527 = vmatprep.subr.bf16.mxu0 0
  %528 = vmatpush1.bf16.msra.mxu0 0
  %529 = vmatprep.subr.bf16.mxu0 0
  %530 = vmatpush1.bf16.msra.mxu0 0
  %531 = vmatprep.subr.bf16.mxu0 0
  %532 = vmatpush1.bf16.msra.mxu0 0
  %533 = vmatprep.subr.bf16.mxu0 0
  %534 = vmatpush1.bf16.msra.mxu0 0
  %535 = vmatprep.mubr.bf16.mxu0 0
  %536 = vmatmul.mubr.bf16.gmra.mrb[0].mxu0 %v461
  %v537 = vpop.f32.mrb[0].mxu0
  %v538 = vadd.f32 %v498, %v537
  %v539 = vpop.f32.mrb[0].mxu0
  %v540 = vpop.f32.mrb[0].mxu0
  %v541 = vpop.f32.mrb[0].mxu0
  %542 = vdwg.mxu0
  %vm543 = vcmask 1043456
  %v544 = vsel %vm543, %v538, 0.0
  %v545 = vrot.slane %v544, 4
  %v546 = vadd.f32 %v544, %v545
  %v547 = vrot.slane %v546, 2
  %v548 = vadd.f32 %v546, %v547
  %v549 = vrot.slane %v548, 1
  %v550 = vadd.f32 %v548, %v549
  %v551 = vadd.f32 %v550, 0.0
  %s552 = scalar_lea.vmem %s0, 12
  %v553 = vld [vmem:[%s552] sm:$0x77]
  %v554 = vld [vmem:[%s552 + $0x8] sm:$0x7]
  %v557 = vunpack.c.l.b16 %v553
  %v558 = vunpack.c.h.b16 %v553
  %v559 = vunpack.c.l.b16 %v554
  %v560 = vpack.c.b16 %v557, %v557
  %v561 = vpack.c.b16 %v558, %v558
  %v562 = vpack.c.b16 %v559, %v559
  %v564 = vshrl.u32 %v560, 16
  %v566 = vshll.u32 %v560, 16
  %v568 = vrot.slane %v566, 1
  %v569 = vor.u32 %v564, %v568
  %v571 = vshrl.u32 %v561, 16
  %v573 = vshll.u32 %v561, 16
  %v575 = vrot.slane %v573, 1
  %v576 = vor.u32 %v571, %v575
  %v578 = vshrl.u32 %v562, 16
  %v580 = vshll.u32 %v562, 16
  %v582 = vrot.slane %v580, 1
  %v583 = vor.u32 %v578, %v582
  %v587 = vsel %vm255, %v583, 0
  %589 = vmatprep.subr.bf16.mxu0 0
  %590 = vmatpush1.bf16.msra.mxu0 %v215
  %591 = vmatprep.subr.bf16.mxu0 0
  %592 = vmatpush1.bf16.msra.mxu0 %v216
  %593 = vmatprep.subr.bf16.mxu0 0
  %594 = vmatpush1.bf16.msra.mxu0 %v217
  %595 = vmatprep.subr.bf16.mxu0 0
  %596 = vmatpush1.bf16.msra.mxu0 %v218
  %597 = vmatprep.subr.bf16.mxu0 0
  %598 = vmatpush1.bf16.msra.mxu0 %v219
  %599 = vmatprep.subr.bf16.mxu0 0
  %600 = vmatpush1.bf16.msra.mxu0 %v220
  %601 = vmatprep.subr.bf16.mxu0 0
  %602 = vmatpush1.bf16.msra.mxu0 %v221
  %603 = vmatprep.subr.bf16.mxu0 0
  %604 = vmatpush1.bf16.msra.mxu0 %v222
  %605 = vmatprep.subr.bf16.mxu0 0
  %606 = vmatpush1.bf16.msra.mxu0 %v223
  %607 = vmatprep.subr.bf16.mxu0 0
  %608 = vmatpush1.bf16.msra.mxu0 %v224
  %609 = vmatprep.subr.bf16.mxu0 0
  %610 = vmatpush1.bf16.msra.mxu0 %v225
  %611 = vmatprep.subr.bf16.mxu0 0
  %612 = vmatpush1.bf16.msra.mxu0 %v226
  %613 = vmatprep.subr.bf16.mxu0 0
  %614 = vmatpush1.bf16.msra.mxu0 %v227
  %615 = vmatprep.subr.bf16.mxu0 0
  %616 = vmatpush1.bf16.msra.mxu0 %v228
  %617 = vmatprep.subr.bf16.mxu0 0
  %618 = vmatpush1.bf16.msra.mxu0 %v229
  %619 = vmatprep.subr.bf16.mxu0 0
  %620 = vmatpush1.bf16.msra.mxu0 %v230
  %621 = vmatprep.mubr.bf16.mxu0 %v576
  %622 = vmatmul.mubr.bf16.gmra.mrb[0].mxu0 %v569
  %v623 = vpop.f32.mrb[0].mxu0
  %v624 = vadd.f32 0.0, %v623
  %v625 = vpop.f32.mrb[0].mxu0
  %v626 = vpop.f32.mrb[0].mxu0
  %v627 = vpop.f32.mrb[0].mxu0
  %628 = vdwg.mxu0
  %629 = vmatprep.subr.bf16.mxu0 0
  %630 = vmatpush1.bf16.msra.mxu0 %v231
  %631 = vmatprep.subr.bf16.mxu0 0
  %632 = vmatpush1.bf16.msra.mxu0 %v232
  %633 = vmatprep.subr.bf16.mxu0 0
  %634 = vmatpush1.bf16.msra.mxu0 %v233
  %635 = vmatprep.subr.bf16.mxu0 0
  %636 = vmatpush1.bf16.msra.mxu0 %v234
  %637 = vmatprep.subr.bf16.mxu0 0
  %638 = vmatpush1.bf16.msra.mxu0 0
  %639 = vmatprep.subr.bf16.mxu0 0
  %640 = vmatpush1.bf16.msra.mxu0 0
  %641 = vmatprep.subr.bf16.mxu0 0
  %642 = vmatpush1.bf16.msra.mxu0 0
  %643 = vmatprep.subr.bf16.mxu0 0
  %644 = vmatpush1.bf16.msra.mxu0 0
  %645 = vmatprep.subr.bf16.mxu0 0
  %646 = vmatpush1.bf16.msra.mxu0 0
  %647 = vmatprep.subr.bf16.mxu0 0
  %648 = vmatpush1.bf16.msra.mxu0 0
  %649 = vmatprep.subr.bf16.mxu0 0
  %650 = vmatpush1.bf16.msra.mxu0 0
  %651 = vmatprep.subr.bf16.mxu0 0
  %652 = vmatpush1.bf16.msra.mxu0 0
  %653 = vmatprep.subr.bf16.mxu0 0
  %654 = vmatpush1.bf16.msra.mxu0 0
  %655 = vmatprep.subr.bf16.mxu0 0
  %656 = vmatpush1.bf16.msra.mxu0 0
  %657 = vmatprep.subr.bf16.mxu0 0
  %658 = vmatpush1.bf16.msra.mxu0 0
  %659 = vmatprep.subr.bf16.mxu0 0
  %660 = vmatpush1.bf16.msra.mxu0 0
  %661 = vmatprep.mubr.bf16.mxu0 0
  %662 = vmatmul.mubr.bf16.gmra.mrb[0].mxu0 %v587
  %v663 = vpop.f32.mrb[0].mxu0
  %v664 = vadd.f32 %v624, %v663
  %v665 = vpop.f32.mrb[0].mxu0
  %v666 = vpop.f32.mrb[0].mxu0
  %v667 = vpop.f32.mrb[0].mxu0
  %668 = vdwg.mxu0
  %v671 = vsel %vm255, %v562, 0
  %673 = vmatprep.subr.bf16.mxu0 0
  %674 = vmatpush1.bf16.msra.mxu0 %v421
  %675 = vmatprep.subr.bf16.mxu0 0
  %676 = vmatpush1.bf16.msra.mxu0 %v422
  %677 = vmatprep.subr.bf16.mxu0 0
  %678 = vmatpush1.bf16.msra.mxu0 %v423
  %679 = vmatprep.subr.bf16.mxu0 0
  %680 = vmatpush1.bf16.msra.mxu0 %v424
  %681 = vmatprep.subr.bf16.mxu0 0
  %682 = vmatpush1.bf16.msra.mxu0 %v425
  %683 = vmatprep.subr.bf16.mxu0 0
  %684 = vmatpush1.bf16.msra.mxu0 %v426
  %685 = vmatprep.subr.bf16.mxu0 0
  %686 = vmatpush1.bf16.msra.mxu0 %v427
  %687 = vmatprep.subr.bf16.mxu0 0
  %688 = vmatpush1.bf16.msra.mxu0 %v428
  %689 = vmatprep.subr.bf16.mxu0 0
  %690 = vmatpush1.bf16.msra.mxu0 %v429
  %691 = vmatprep.subr.bf16.mxu0 0
  %692 = vmatpush1.bf16.msra.mxu0 %v430
  %693 = vmatprep.subr.bf16.mxu0 0
  %694 = vmatpush1.bf16.msra.mxu0 %v431
  %695 = vmatprep.subr.bf16.mxu0 0
  %696 = vmatpush1.bf16.msra.mxu0 %v432
  %697 = vmatprep.subr.bf16.mxu0 0
  %698 = vmatpush1.bf16.msra.mxu0 %v433
  %699 = vmatprep.subr.bf16.mxu0 0
  %700 = vmatpush1.bf16.msra.mxu0 %v434
  %701 = vmatprep.subr.bf16.mxu0 0
  %702 = vmatpush1.bf16.msra.mxu0 %v435
  %703 = vmatprep.subr.bf16.mxu0 0
  %704 = vmatpush1.bf16.msra.mxu0 %v436
  %705 = vmatprep.mubr.bf16.mxu0 %v561
  %706 = vmatmul.mubr.bf16.gmra.mrb[0].mxu0 %v560
  %v707 = vpop.f32.mrb[0].mxu0
  %v708 = vadd.f32 %v664, %v707
  %v709 = vpop.f32.mrb[0].mxu0
  %v710 = vpop.f32.mrb[0].mxu0
  %v711 = vpop.f32.mrb[0].mxu0
  %712 = vdwg.mxu0
  %713 = vmatprep.subr.bf16.mxu0 0
  %714 = vmatpush1.bf16.msra.mxu0 %v437
  %715 = vmatprep.subr.bf16.mxu0 0
  %716 = vmatpush1.bf16.msra.mxu0 %v438
  %717 = vmatprep.subr.bf16.mxu0 0
  %718 = vmatpush1.bf16.msra.mxu0 %v439
  %719 = vmatprep.subr.bf16.mxu0 0
  %720 = vmatpush1.bf16.msra.mxu0 %v440
  %721 = vmatprep.subr.bf16.mxu0 0
  %722 = vmatpush1.bf16.msra.mxu0 0
  %723 = vmatprep.subr.bf16.mxu0 0
  %724 = vmatpush1.bf16.msra.mxu0 0
  %725 = vmatprep.subr.bf16.mxu0 0
  %726 = vmatpush1.bf16.msra.mxu0 0
  %727 = vmatprep.subr.bf16.mxu0 0
  %728 = vmatpush1.bf16.msra.mxu0 0
  %729 = vmatprep.subr.bf16.mxu0 0
  %730 = vmatpush1.bf16.msra.mxu0 0
  %731 = vmatprep.subr.bf16.mxu0 0
  %732 = vmatpush1.bf16.msra.mxu0 0
  %733 = vmatprep.subr.bf16.mxu0 0
  %734 = vmatpush1.bf16.msra.mxu0 0
  %735 = vmatprep.subr.bf16.mxu0 0
  %736 = vmatpush1.bf16.msra.mxu0 0
  %737 = vmatprep.subr.bf16.mxu0 0
  %738 = vmatpush1.bf16.msra.mxu0 0
  %739 = vmatprep.subr.bf16.mxu0 0
  %740 = vmatpush1.bf16.msra.mxu0 0
  %741 = vmatprep.subr.bf16.mxu0 0
  %742 = vmatpush1.bf16.msra.mxu0 0
  %743 = vmatprep.subr.bf16.mxu0 0
  %744 = vmatpush1.bf16.msra.mxu0 0
  %745 = vmatprep.mubr.bf16.mxu0 0
  %746 = vmatmul.mubr.bf16.gmra.mrb[0].mxu0 %v671
  %v747 = vpop.f32.mrb[0].mxu0
  %v748 = vadd.f32 %v708, %v747
  %v749 = vpop.f32.mrb[0].mxu0
  %v750 = vpop.f32.mrb[0].mxu0
  %v751 = vpop.f32.mrb[0].mxu0
  %752 = vdwg.mxu0
  %v753 = vsel %vm543, %v748, 0.0
  %v754 = vrot.slane %v753, 4
  %v755 = vadd.f32 %v753, %v754
  %v756 = vrot.slane %v755, 2
  %v757 = vadd.f32 %v755, %v756
  %v758 = vrot.slane %v757, 1
  %v759 = vadd.f32 %v757, %v758
  %v760 = vadd.f32 %v551, %v759
  %v761 = vld [vmem:[%s2] sm:$0xff]
  %v762 = vld [vmem:[%s2 + $0x8] sm:$0xff]
  %v763 = vld [vmem:[%s2 + $0x10] sm:$0xff]
  %v764 = vld [vmem:[%s2 + $0x18] sm:$0xff]
  %v765 = vld [vmem:[%s2 + $0x20] sm:$0xff]
  %v766 = vld [vmem:[%s2 + $0x28] sm:$0xff]
  %v767 = vld [vmem:[%s2 + $0x30] sm:$0xff]
  %v768 = vld [vmem:[%s2 + $0x38] sm:$0xff]
  %v769 = vld [vmem:[%s2 + $0x40] sm:$0xff]
  %v770 = vld [vmem:[%s2 + $0x48] sm:$0xff]
  %v771 = vld [vmem:[%s2 + $0x50] sm:$0xff]
  %v772 = vld [vmem:[%s2 + $0x58] sm:$0xff]
  %v773 = vld [vmem:[%s2 + $0x60] sm:$0xff]
  %v774 = vld [vmem:[%s2 + $0x68] sm:$0xff]
  %v775 = vld [vmem:[%s2 + $0x70] sm:$0xff]
  %v776 = vld [vmem:[%s2 + $0x78] sm:$0xff]
  %777 = vmatprep.subr.mxu0 0.0
  %778 = vmatpush1.msra.mxu0 %v761
  %779 = vmatprep.subr.mxu0 0.0
  %780 = vmatpush1.msra.mxu0 %v762
  %781 = vmatprep.subr.mxu0 0.0
  %782 = vmatpush1.msra.mxu0 %v763
  %783 = vmatprep.subr.mxu0 0.0
  %784 = vmatpush1.msra.mxu0 %v764
  %785 = vmatprep.subr.mxu0 0.0
  %786 = vmatpush1.msra.mxu0 %v765
  %787 = vmatprep.subr.mxu0 0.0
  %788 = vmatpush1.msra.mxu0 %v766
  %789 = vmatprep.subr.mxu0 0.0
  %790 = vmatpush1.msra.mxu0 %v767
  %791 = vmatprep.subr.mxu0 0.0
  %792 = vmatpush1.msra.mxu0 %v768
  %793 = vmatprep.subr.mxu0 0.0
  %794 = vmatpush1.msra.mxu0 %v769
  %795 = vmatprep.subr.mxu0 0.0
  %796 = vmatpush1.msra.mxu0 %v770
  %797 = vmatprep.subr.mxu0 0.0
  %798 = vmatpush1.msra.mxu0 %v771
  %799 = vmatprep.subr.mxu0 0.0
  %800 = vmatpush1.msra.mxu0 %v772
  %801 = vmatprep.subr.mxu0 0.0
  %802 = vmatpush1.msra.mxu0 %v773
  %803 = vmatprep.subr.mxu0 0.0
  %804 = vmatpush1.msra.mxu0 %v774
  %805 = vmatprep.subr.mxu0 0.0
  %806 = vmatpush1.msra.mxu0 %v775
  %807 = vmatprep.subr.mxu0 0.0
  %808 = vmatpush1.msra.mxu0 %v776
  %809 = vmatprep.subr.mxu0 0.0
  %810 = vmatpush1.msra.mxu0 0.0
  %811 = vmatprep.subr.mxu0 0.0
  %812 = vmatpush1.msra.mxu0 0.0
  %813 = vmatprep.subr.mxu0 0.0
  %814 = vmatpush1.msra.mxu0 0.0
  %815 = vmatprep.subr.mxu0 0.0
  %816 = vmatpush1.msra.mxu0 0.0
  %817 = vmatprep.subr.mxu0 0.0
  %818 = vmatpush1.msra.mxu0 0.0
  %819 = vmatprep.subr.mxu0 0.0
  %820 = vmatpush1.msra.mxu0 0.0
  %821 = vmatprep.subr.mxu0 0.0
  %822 = vmatpush1.msra.mxu0 0.0
  %823 = vmatprep.subr.mxu0 0.0
  %824 = vmatpush1.msra.mxu0 0.0
  %825 = vmatprep.subr.mxu0 0.0
  %826 = vmatpush1.msra.mxu0 0.0
  %827 = vmatprep.subr.mxu0 0.0
  %828 = vmatpush1.msra.mxu0 0.0
  %829 = vmatprep.subr.mxu0 0.0
  %830 = vmatpush1.msra.mxu0 0.0
  %831 = vmatprep.subr.mxu0 0.0
  %832 = vmatpush1.msra.mxu0 0.0
  %833 = vmatprep.subr.mxu0 0.0
  %834 = vmatpush1.msra.mxu0 0.0
  %835 = vmatprep.subr.mxu0 0.0
  %836 = vmatpush1.msra.mxu0 0.0
  %837 = vmatprep.subr.mxu0 0.0
  %838 = vmatpush1.msra.mxu0 0.0
  %839 = vmatprep.subr.mxu0 0.0
  %840 = vmatpush1.msra.mxu0 0.0
  %841 = vmatprep.mubr.f32.mxu0 0.0
  %842 = vmatmul.mubr.f32.gmra.mrb[0].mxu0 %v760
  %v843 = vpop.f32.mrb[0].mxu0
  %v844 = vadd.f32 0.0, %v843
  %v845 = vpop.f32.mrb[0].mxu0
  %846 = vdwg.mxu0
  %v847 = vmul.f32 %v844, 0.03125
  %v848 = vlaneseq
  %v849 = vshrl.u32 %v848, 7
  %v850 = vsub.s32 0, %v849
  %v851 = vrot.slane %v847, %v850
  %v852 = vsub.f32 %v538, %v851
  %v853 = vmul.f32 %v852, %v852
  %v854 = vsel %vm543, %v853, 0.0
  %v855 = vrot.slane %v854, 4
  %v856 = vadd.f32 %v854, %v855
  %v857 = vrot.slane %v856, 2
  %v858 = vadd.f32 %v856, %v857
  %v859 = vrot.slane %v858, 1
  %v860 = vadd.f32 %v858, %v859
  %v861 = vadd.f32 %v860, 0.0
  %v862 = vsub.f32 %v748, %v851
  %v863 = vmul.f32 %v862, %v862
  %v864 = vsel %vm543, %v863, 0.0
  %v865 = vrot.slane %v864, 4
  %v866 = vadd.f32 %v864, %v865
  %v867 = vrot.slane %v866, 2
  %v868 = vadd.f32 %v866, %v867
  %v869 = vrot.slane %v868, 1
  %v870 = vadd.f32 %v868, %v869
  %v871 = vadd.f32 %v861, %v870
  %872 = vmatprep.subr.mxu0 0.0
  %873 = vmatpush1.msra.mxu0 %v761
  %874 = vmatprep.subr.mxu0 0.0
  %875 = vmatpush1.msra.mxu0 %v762
  %876 = vmatprep.subr.mxu0 0.0
  %877 = vmatpush1.msra.mxu0 %v763
  %878 = vmatprep.subr.mxu0 0.0
  %879 = vmatpush1.msra.mxu0 %v764
  %880 = vmatprep.subr.mxu0 0.0
  %881 = vmatpush1.msra.mxu0 %v765
  %882 = vmatprep.subr.mxu0 0.0
  %883 = vmatpush1.msra.mxu0 %v766
  %884 = vmatprep.subr.mxu0 0.0
  %885 = vmatpush1.msra.mxu0 %v767
  %886 = vmatprep.subr.mxu0 0.0
  %887 = vmatpush1.msra.mxu0 %v768
  %888 = vmatprep.subr.mxu0 0.0
  %889 = vmatpush1.msra.mxu0 %v769
  %890 = vmatprep.subr.mxu0 0.0
  %891 = vmatpush1.msra.mxu0 %v770
  %892 = vmatprep.subr.mxu0 0.0
  %893 = vmatpush1.msra.mxu0 %v771
  %894 = vmatprep.subr.mxu0 0.0
  %895 = vmatpush1.msra.mxu0 %v772
  %896 = vmatprep.subr.mxu0 0.0
  %897 = vmatpush1.msra.mxu0 %v773
  %898 = vmatprep.subr.mxu0 0.0
  %899 = vmatpush1.msra.mxu0 %v774
  %900 = vmatprep.subr.mxu0 0.0
  %901 = vmatpush1.msra.mxu0 %v775
  %902 = vmatprep.subr.mxu0 0.0
  %903 = vmatpush1.msra.mxu0 %v776
  %904 = vmatprep.subr.mxu0 0.0
  %905 = vmatpush1.msra.mxu0 0.0
  %906 = vmatprep.subr.mxu0 0.0
  %907 = vmatpush1.msra.mxu0 0.0
  %908 = vmatprep.subr.mxu0 0.0
  %909 = vmatpush1.msra.mxu0 0.0
  %910 = vmatprep.subr.mxu0 0.0
  %911 = vmatpush1.msra.mxu0 0.0
  %912 = vmatprep.subr.mxu0 0.0
  %913 = vmatpush1.msra.mxu0 0.0
  %914 = vmatprep.subr.mxu0 0.0
  %915 = vmatpush1.msra.mxu0 0.0
  %916 = vmatprep.subr.mxu0 0.0
  %917 = vmatpush1.msra.mxu0 0.0
  %918 = vmatprep.subr.mxu0 0.0
  %919 = vmatpush1.msra.mxu0 0.0
  %920 = vmatprep.subr.mxu0 0.0
  %921 = vmatpush1.msra.mxu0 0.0
  %922 = vmatprep.subr.mxu0 0.0
  %923 = vmatpush1.msra.mxu0 0.0
  %924 = vmatprep.subr.mxu0 0.0
  %925 = vmatpush1.msra.mxu0 0.0
  %926 = vmatprep.subr.mxu0 0.0
  %927 = vmatpush1.msra.mxu0 0.0
  %928 = vmatprep.subr.mxu0 0.0
  %929 = vmatpush1.msra.mxu0 0.0
  %930 = vmatprep.subr.mxu0 0.0
  %931 = vmatpush1.msra.mxu0 0.0
  %932 = vmatprep.subr.mxu0 0.0
  %933 = vmatpush1.msra.mxu0 0.0
  %934 = vmatprep.subr.mxu0 0.0
  %935 = vmatpush1.msra.mxu0 0.0
  %936 = vmatprep.mubr.f32.mxu0 0.0
  %937 = vmatmul.mubr.f32.gmra.mrb[0].mxu0 %v871
  %v938 = vpop.f32.mrb[0].mxu0
  %v939 = vadd.f32 0.0, %v938
  %v940 = vpop.f32.mrb[0].mxu0
  %941 = vdwg.mxu0
  %v942 = vmul.f32 %v939, 0.03125
  %v943 = vld [vmem:[%s3] sm:$0x1]
  %v944 = vadd.f32 %v942, 1e-05
  %v945 = vrsqrt.pop %v944
  %v946 = vmul.f32 %v943, %v945
  %v947 = vld [vmem:[%s4] sm:$0x1]
  %v948 = vmul.f32 %v847, %v946
  %v949 = vsub.f32 %v947, %v948
  %v951 = vlaneseq
  %v952 = vshrl.u32 %v951, 7
  %v953 = vsub.s32 0, %v952
  %v954 = vrot.slane %v946, %v953
  %v956 = vmul.f32 %v538, %v954
  %v958 = vlaneseq
  %v959 = vshrl.u32 %v958, 7
  %v960 = vsub.s32 0, %v959
  %v961 = vrot.slane %v949, %v960
  %v963 = vadd.f32 %v956, %v961
  %v964 = vmax.f32 %v963, 0.0
  %v965 = vpack.c.bf16 %v964, %v964
  %966 = vst [vmem:[%s5] sm:$0x3] %v965
  %v967 = vmul.f32 %v748, %v954
  %v968 = vadd.f32 %v967, %v961
  %v969 = vmax.f32 %v968, 0.0
  %v970 = vpack.c.bf16 %v969, %v969
  %v972 = vunpack.c.l.b16 %v970
  %v973 = vpack.c.b16 %v972, %v972
  %v974 = vrot.slane %v973, 6
  %976 = vst [vmem:[%s5] sm:$0xc] %v974
  // Predicated region
  $region22: #{_lambda_.5} parent=0 // pred_check
    _
  $region23: #{_lambda_.5} parent=0 // pred_check_branch
    %978 = sbr.rel (0) target = $region25
  $region24: #{_lambda_.5} parent=0 // pred_region
    _
  $region25: #{_lambda_.5} parent=0 // pred_fallthru
    _
  // Predicated region
  $region26: #{_lambda_.5} parent=0 // pred_check
    _
  $region27: #{_lambda_.5} parent=0 // pred_check_branch
    %980 = sbr.rel (0) target = $region29
  $region28: #{_lambda_.5} parent=0 // pred_region
    _
  $region29: #{_lambda_.5} parent=0 // pred_fallthru
    _

</llo_original>
